<compile_context>
chip_gen: v7x
topology: tpu7x:2x2x1
jax: 0.10.0
libtpu: 0.0.40
codegen_flags: <defaults>
</compile_context>

<pallas_src>
import functools

import numpy as np
import jax
import jax.numpy as jnp
from jax.experimental import pallas as pl
from jax.experimental.pallas import tpu as pltpu


def _coords_and_weights(k, dx, dy, H, W):
    """Clamped source-corner indices and bilinear offsets per output pixel, flat (1, N)."""
    N = H * W
    i = jax.lax.broadcasted_iota(jnp.int32, (1, N), 1)
    if (W & (W - 1)) == 0:                      # power of two: avoid integer div/mod
        yu_i = i >> (W.bit_length() - 1)
        xu_i = i & (W - 1)
    else:
        yu_i = i // W
        xu_i = i - yu_i * W
    xu = xu_i.astype(jnp.float32)
    yu = yu_i.astype(jnp.float32)

    xur = (xu - dx) * (1.0 / W) - 0.5
    yur = (yu - dy) * (1.0 / H) - 0.5
    ru2 = xur * xur + yur * yur
    inv = 1.0 / (1.0 - k * ru2)                 # == rd / ru of the atan2/cos/sin path
    xd = (xur * inv + 0.5) * W + dx
    yd = (yur * inv + 0.5) * H + dy

    xf = jnp.floor(xd)
    yf = jnp.floor(yd)
    ox = xd - xf
    oy = yd - yf

    xf_i = xf.astype(jnp.int32)
    yf_i = yf.astype(jnp.int32)
    xf_c = jnp.clip(xf_i, 0, W - 1)
    xc_c = jnp.clip(xf_i + 1, 0, W - 1)         # floor+1 instead of ceil (same blend result)
    yf_c = jnp.clip(yf_i, 0, H - 1)
    yc_c = jnp.clip(yf_i + 1, 0, H - 1)
    return xf_c, xc_c, yf_c, yc_c, ox, oy


def _undistort_gather_kernel(k_ref, dx_ref, dy_ref, im_ref, out_ref, *, H, W):
    """Primary kernel: O(C*N) 4-corner gather + VPU bilinear blend."""
    N = H * W
    b = pl.program_id(0)
    xf, xc, yf, yc, ox, oy = _coords_and_weights(
        k_ref[b, 0], dx_ref[b, 0], dy_ref[b, 0], H, W)
    onx = 1.0 - ox
    ony = 1.0 - oy

    im = im_ref[0].astype(jnp.float32)          # (C, N) f32, VMEM resident
    C = im.shape[0]

    def gather(yi, xi):                         # (1, N) indices -> (C, N) samples
        idx = jnp.broadcast_to(yi * W + xi, (C, N))
        return jnp.take_along_axis(im, idx, axis=1)

    res = ((onx * ony) * gather(yf, xf) + (ox * ony) * gather(yf, xc)
           + (onx * oy) * gather(yc, xf) + (ox * oy) * gather(yc, xc))
    out_ref[0] = res.astype(out_ref.dtype)


def _undistort_onehot_kernel(k_ref, dx_ref, dy_ref, im_ref, out_ref, *, H, W):
    """Fallback (previous formulation): bilinear gather as one-hot matrix x image on the MXU.

    O(C*N^2); only used if the dynamic-gather lowering is unavailable on this jax/libtpu.
    """
    N = H * W
    b = pl.program_id(0)
    xf, xc, yf, yc, ox, oy = _coords_and_weights(
        k_ref[b, 0], dx_ref[b, 0], dy_ref[b, 0], H, W)
    onx = 1.0 - ox
    ony = 1.0 - oy
    j = jax.lax.broadcasted_iota(jnp.int32, (N, N), 0)

    def onehot(yi, xi):                         # (1, N) indices -> (N, N) one-hot columns
        return (j == (yi * W + xi)).astype(jnp.float32)

    wmat_t = ((onx * ony) * onehot(yf, xf) + (ox * ony) * onehot(yf, xc)
              + (onx * oy) * onehot(yc, xf) + (ox * oy) * onehot(yc, xc))
    im = im_ref[0].astype(jnp.float32)
    out_ref[0] = jnp.dot(im, wmat_t, preferred_element_type=jnp.float32).astype(out_ref.dtype)


def _run(kernel_body, im_flat, k, dx, dy, H, W):
    B, C, N = im_flat.shape
    kernel = functools.partial(kernel_body, H=H, W=W)
    out = pl.pallas_call(
        kernel,
        out_shape=jax.ShapeDtypeStruct((B, C, N), jnp.bfloat16),
        grid_spec=pltpu.PrefetchScalarGridSpec(
            num_scalar_prefetch=3,                          # k, dx, dy live in SMEM
            grid=(B,),
            in_specs=[pl.BlockSpec((1, C, N), lambda b, *_: (b, 0, 0))],
            out_specs=pl.BlockSpec((1, C, N), lambda b, *_: (b, 0, 0)),
        ),
        compiler_params=pltpu.CompilerParams(dimension_semantics=("parallel",)),
    )(k, dx, dy, im_flat)
    return jax.block_until_ready(out)


def undistort(im_d, k, dx, dy):
    """im_d: uint8 (B, C, H, W); k, dx, dy: float32 (B, 1). Returns uint8 (B, C, H, W)."""
    B, C, H, W = im_d.shape
    N = H * W
    # bf16 through HBM/VMEM (exact for uint8 values 0..255); f32 math in-kernel.
    im_flat = im_d.astype(jnp.bfloat16).reshape(B, C, N)
    # TODO(synk): for large images, tile the output pixel axis in multiples of 128 and keep the
    # source image VMEM-resident across tiles instead of one whole-image block per batch step.
    try:
        out_flat = _run(_undistort_gather_kernel, im_flat, k, dx, dy, H, W)
    except Exception:
        # Dynamic-gather lowering unavailable -> known-good one-hot/MXU path.
        out_flat = _run(_undistort_onehot_kernel, im_flat, k, dx, dy, H, W)
    return out_flat.reshape(B, C, H, W).astype(jnp.uint8)


def undistort_ref(im_d, k, dx, dy):
    """Pure-JAX reference mirroring the torch forward (per-batch params)."""
    B, C, H, W = im_d.shape
    im = im_d.astype(jnp.float32)
    xu = jnp.arange(W, dtype=jnp.float32)[None, None, None, :]
    yu = jnp.arange(H, dtype=jnp.float32)[None, None, :, None]
    kk = k[:, :, None, None]
    dxx = dx[:, :, None, None]
    dyy = dy[:, :, None, None]
    xur = (xu - dxx) / W - 0.5
    yur = (yu - dyy) / H - 0.5
    ru = jnp.sqrt(xur * xur + yur * yur)
    theta = jnp.arctan2(yur, xur)
    rd = ru / (1.0 - kk * ru * ru)
    xd = (rd * jnp.cos(theta) + 0.5) * W + dxx
    yd = (rd * jnp.sin(theta) + 0.5) * H + dyy
    xf = jnp.floor(xd).astype(jnp.int32)
    xc = jnp.ceil(xd).astype(jnp.int32)
    yf = jnp.floor(yd).astype(jnp.int32)
    yc = jnp.ceil(yd).astype(jnp.int32)
    ox = xd - jnp.floor(xd)
    oy = yd - jnp.floor(yd)
    bidx = jnp.arange(B)[:, None, None, None]
    cidx = jnp.arange(C)[None, :, None, None]

    def g(yy, xx):
        return im[bidx, cidx, yy, xx]

    out = ((1 - ox) * (1 - oy) * g(yf, xf) + ox * (1 - oy) * g(yf, xc)
           + (1 - ox) * oy * g(yc, xf) + ox * oy * g(yc, xc))
    return out.astype(jnp.uint8)


if __name__ == "__main__":
    key = jax.random.PRNGKey(0)
    k1, k2, k3, k4 = jax.random.split(key, 4)
    B, C, H, W = 2, 4, 16, 16

    im_d = jax.random.randint(k1, (B, C, H, W), 0, 256, dtype=jnp.int32).astype(jnp.uint8)
    k = jax.random.uniform(k2, (B, 1), jnp.float32, minval=-0.4, maxval=0.0)
    dx = jax.random.uniform(k3, (B, 1), jnp.float32, minval=-4.0, maxval=4.0)
    dy = jax.random.uniform(k4, (B, 1), jnp.float32, minval=-4.0, maxval=4.0)

    out = undistort(im_d, k, dx, dy)
    out = jax.block_until_ready(out)

    ref = undistort_ref(im_d, k, dx, dy)
    assert out.shape == im_d.shape and out.dtype == jnp.uint8
    diff = np.abs(np.asarray(out, dtype=np.int32) - np.asarray(ref, dtype=np.int32))
    assert int(diff.max()) <= 1, f"max diff {int(diff.max())}"
    print("KERNEL_OK")
</pallas_src>

<mosaic_0001>
module attributes {stable_mosaic.version = 11 : i64} {
  func.func @_undistort_gather_kernel(%arg0: i32, %arg1: memref<2x1xf32, #tpu.memory_space<smem>>, %arg2: memref<2x1xf32, #tpu.memory_space<smem>>, %arg3: memref<2x1xf32, #tpu.memory_space<smem>>, %arg4: memref<1x4x256xbf16, #tpu.memory_space<vmem>>, %arg5: memref<1x4x256xbf16, #tpu.memory_space<vmem>>) attributes {dimension_semantics = [#tpu.dimension_semantics<parallel>], iteration_bounds = array<i64: 2>, scalar_prefetch = 3 : i64, scratch_operands = 0 : i64, tpu.core_type = #tpu.core_type<tc>, window_params = [{transform_indices = @transform_0, window_bounds = array<i64: 1, 4, 256>}, {transform_indices = @transform_1, window_bounds = array<i64: 1, 4, 256>}]} {
    %0 = arith.index_cast %arg0 : i32 to index
    %c0 = arith.constant 0 : index
    %1 = memref.load %arg1[%0, %c0] : memref<2x1xf32, #tpu.memory_space<smem>>
    %2 = arith.index_cast %arg0 : i32 to index
    %c0_0 = arith.constant 0 : index
    %3 = memref.load %arg2[%2, %c0_0] : memref<2x1xf32, #tpu.memory_space<smem>>
    %4 = arith.index_cast %arg0 : i32 to index
    %c0_1 = arith.constant 0 : index
    %5 = memref.load %arg3[%4, %c0_1] : memref<2x1xf32, #tpu.memory_space<smem>>
    %6 = tpu.iota {dimensions = array<i32: 1>} : vector<1x256xi32>
    %c4_i32 = arith.constant 4 : i32
    %7 = vector.broadcast %c4_i32 : i32 to vector<1x256xi32>
    %8 = arith.shrsi %6, %7 : vector<1x256xi32>
    %c15_i32 = arith.constant 15 : i32
    %9 = vector.broadcast %c15_i32 : i32 to vector<1x256xi32>
    %10 = arith.andi %6, %9 : vector<1x256xi32>
    %11 = arith.sitofp %10 : vector<1x256xi32> to vector<1x256xf32>
    %12 = arith.sitofp %8 : vector<1x256xi32> to vector<1x256xf32>
    %13 = vector.broadcast %3 : f32 to vector<1x256xf32>
    %14 = arith.subf %11, %13 : vector<1x256xf32>
    %cst = arith.constant 6.250000e-02 : f32
    %15 = vector.broadcast %cst : f32 to vector<1x256xf32>
    %16 = arith.mulf %14, %15 : vector<1x256xf32>
    %cst_2 = arith.constant 5.000000e-01 : f32
    %17 = vector.broadcast %cst_2 : f32 to vector<1x256xf32>
    %18 = arith.subf %16, %17 : vector<1x256xf32>
    %19 = vector.broadcast %5 : f32 to vector<1x256xf32>
    %20 = arith.subf %12, %19 : vector<1x256xf32>
    %cst_3 = arith.constant 6.250000e-02 : f32
    %21 = vector.broadcast %cst_3 : f32 to vector<1x256xf32>
    %22 = arith.mulf %20, %21 : vector<1x256xf32>
    %cst_4 = arith.constant 5.000000e-01 : f32
    %23 = vector.broadcast %cst_4 : f32 to vector<1x256xf32>
    %24 = arith.subf %22, %23 : vector<1x256xf32>
    %25 = arith.mulf %18, %18 : vector<1x256xf32>
    %26 = arith.mulf %24, %24 : vector<1x256xf32>
    %27 = arith.addf %25, %26 : vector<1x256xf32>
    %28 = vector.broadcast %1 : f32 to vector<1x256xf32>
    %29 = arith.mulf %28, %27 : vector<1x256xf32>
    %cst_5 = arith.constant 1.000000e+00 : f32
    %30 = vector.broadcast %cst_5 : f32 to vector<1x256xf32>
    %31 = arith.subf %30, %29 : vector<1x256xf32>
    %cst_6 = arith.constant 1.000000e+00 : f32
    %32 = vector.broadcast %cst_6 : f32 to vector<1x256xf32>
    %33 = arith.divf %32, %31 : vector<1x256xf32>
    %34 = arith.mulf %18, %33 : vector<1x256xf32>
    %cst_7 = arith.constant 5.000000e-01 : f32
    %35 = vector.broadcast %cst_7 : f32 to vector<1x256xf32>
    %36 = arith.addf %34, %35 : vector<1x256xf32>
    %cst_8 = arith.constant 1.600000e+01 : f32
    %37 = vector.broadcast %cst_8 : f32 to vector<1x256xf32>
    %38 = arith.mulf %36, %37 : vector<1x256xf32>
    %39 = vector.broadcast %3 : f32 to vector<1x256xf32>
    %40 = arith.addf %38, %39 : vector<1x256xf32>
    %41 = arith.mulf %24, %33 : vector<1x256xf32>
    %cst_9 = arith.constant 5.000000e-01 : f32
    %42 = vector.broadcast %cst_9 : f32 to vector<1x256xf32>
    %43 = arith.addf %41, %42 : vector<1x256xf32>
    %cst_10 = arith.constant 1.600000e+01 : f32
    %44 = vector.broadcast %cst_10 : f32 to vector<1x256xf32>
    %45 = arith.mulf %43, %44 : vector<1x256xf32>
    %46 = vector.broadcast %5 : f32 to vector<1x256xf32>
    %47 = arith.addf %45, %46 : vector<1x256xf32>
    %48 = math.floor %40 : vector<1x256xf32>
    %49 = math.floor %47 : vector<1x256xf32>
    %50 = arith.subf %40, %48 : vector<1x256xf32>
    %51 = arith.subf %47, %49 : vector<1x256xf32>
    %52 = arith.fptosi %48 : vector<1x256xf32> to vector<1x256xi32>
    %53 = arith.fptosi %49 : vector<1x256xf32> to vector<1x256xi32>
    %c0_i32 = arith.constant 0 : i32
    %c15_i32_11 = arith.constant 15 : i32
    %54 = vector.broadcast %c0_i32 : i32 to vector<1x256xi32>
    %55 = arith.maxsi %54, %52 : vector<1x256xi32>
    %56 = vector.broadcast %c15_i32_11 : i32 to vector<1x256xi32>
    %57 = arith.minsi %56, %55 : vector<1x256xi32>
    %c1_i32 = arith.constant 1 : i32
    %58 = vector.broadcast %c1_i32 : i32 to vector<1x256xi32>
    %59 = arith.addi %52, %58 : vector<1x256xi32>
    %c0_i32_12 = arith.constant 0 : i32
    %c15_i32_13 = arith.constant 15 : i32
    %60 = vector.broadcast %c0_i32_12 : i32 to vector<1x256xi32>
    %61 = arith.maxsi %60, %59 : vector<1x256xi32>
    %62 = vector.broadcast %c15_i32_13 : i32 to vector<1x256xi32>
    %63 = arith.minsi %62, %61 : vector<1x256xi32>
    %c0_i32_14 = arith.constant 0 : i32
    %c15_i32_15 = arith.constant 15 : i32
    %64 = vector.broadcast %c0_i32_14 : i32 to vector<1x256xi32>
    %65 = arith.maxsi %64, %53 : vector<1x256xi32>
    %66 = vector.broadcast %c15_i32_15 : i32 to vector<1x256xi32>
    %67 = arith.minsi %66, %65 : vector<1x256xi32>
    %c1_i32_16 = arith.constant 1 : i32
    %68 = vector.broadcast %c1_i32_16 : i32 to vector<1x256xi32>
    %69 = arith.addi %53, %68 : vector<1x256xi32>
    %c0_i32_17 = arith.constant 0 : i32
    %c15_i32_18 = arith.constant 15 : i32
    %70 = vector.broadcast %c0_i32_17 : i32 to vector<1x256xi32>
    %71 = arith.maxsi %70, %69 : vector<1x256xi32>
    %72 = vector.broadcast %c15_i32_18 : i32 to vector<1x256xi32>
    %73 = arith.minsi %72, %71 : vector<1x256xi32>
    %cst_19 = arith.constant 1.000000e+00 : f32
    %74 = vector.broadcast %cst_19 : f32 to vector<1x256xf32>
    %75 = arith.subf %74, %50 : vector<1x256xf32>
    %cst_20 = arith.constant 1.000000e+00 : f32
    %76 = vector.broadcast %cst_20 : f32 to vector<1x256xf32>
    %77 = arith.subf %76, %51 : vector<1x256xf32>
    %c0_21 = arith.constant 0 : index
    %c0_22 = arith.constant 0 : index
    %c0_23 = arith.constant 0 : index
    %78 = vector.load %arg4[%c0_21, %c0_22, %c0_23] : memref<1x4x256xbf16, #tpu.memory_space<vmem>>, vector<1x4x256xbf16>
    %79 = vector.shape_cast %78 : vector<1x4x256xbf16> to vector<4x256xbf16>
    %80 = arith.extf %79 : vector<4x256xbf16> to vector<4x256xf32>
    %81 = arith.mulf %75, %77 : vector<1x256xf32>
    %c16_i32 = arith.constant 16 : i32
    %82 = vector.broadcast %c16_i32 : i32 to vector<1x256xi32>
    %83 = arith.muli %67, %82 : vector<1x256xi32>
    %84 = arith.addi %83, %57 : vector<1x256xi32>
    %85 = vector.shape_cast %84 : vector<1x256xi32> to vector<1x256xi32>
    %86 = vector.broadcast %85 : vector<1x256xi32> to vector<4x256xi32>
    %c0_i32_24 = arith.constant 0 : i32
    %87 = vector.broadcast %c0_i32_24 : i32 to vector<4x256xi32>
    %88 = arith.cmpi slt, %86, %87 : vector<4x256xi32>
    %c256_i32 = arith.constant 256 : i32
    %89 = vector.broadcast %c256_i32 : i32 to vector<4x256xi32>
    %90 = arith.addi %86, %89 : vector<4x256xi32>
    %91 = arith.select %88, %90, %86 : vector<4x256xi1>, vector<4x256xi32>
    %92 = vector.shape_cast %91 : vector<4x256xi32> to vector<4x256x1xi32>
    %93 = vector.shape_cast %92 : vector<4x256x1xi32> to vector<4x256xi32>
    %94 = tpu.dynamic_gather %80[%93] in [1] : vector<4x256xf32>, vector<4x256xi32> -> vector<4x256xf32>
    %95 = vector.broadcast %81 : vector<1x256xf32> to vector<4x256xf32>
    %96 = arith.mulf %95, %94 : vector<4x256xf32>
    %97 = arith.mulf %50, %77 : vector<1x256xf32>
    %c16_i32_25 = arith.constant 16 : i32
    %98 = vector.broadcast %c16_i32_25 : i32 to vector<1x256xi32>
    %99 = arith.muli %67, %98 : vector<1x256xi32>
    %100 = arith.addi %99, %63 : vector<1x256xi32>
    %101 = vector.shape_cast %100 : vector<1x256xi32> to vector<1x256xi32>
    %102 = vector.broadcast %101 : vector<1x256xi32> to vector<4x256xi32>
    %c0_i32_26 = arith.constant 0 : i32
    %103 = vector.broadcast %c0_i32_26 : i32 to vector<4x256xi32>
    %104 = arith.cmpi slt, %102, %103 : vector<4x256xi32>
    %c256_i32_27 = arith.constant 256 : i32
    %105 = vector.broadcast %c256_i32_27 : i32 to vector<4x256xi32>
    %106 = arith.addi %102, %105 : vector<4x256xi32>
    %107 = arith.select %104, %106, %102 : vector<4x256xi1>, vector<4x256xi32>
    %108 = vector.shape_cast %107 : vector<4x256xi32> to vector<4x256x1xi32>
    %109 = vector.shape_cast %108 : vector<4x256x1xi32> to vector<4x256xi32>
    %110 = tpu.dynamic_gather %80[%109] in [1] : vector<4x256xf32>, vector<4x256xi32> -> vector<4x256xf32>
    %111 = vector.broadcast %97 : vector<1x256xf32> to vector<4x256xf32>
    %112 = arith.mulf %111, %110 : vector<4x256xf32>
    %113 = arith.addf %96, %112 : vector<4x256xf32>
    %114 = arith.mulf %75, %51 : vector<1x256xf32>
    %c16_i32_28 = arith.constant 16 : i32
    %115 = vector.broadcast %c16_i32_28 : i32 to vector<1x256xi32>
    %116 = arith.muli %73, %115 : vector<1x256xi32>
    %117 = arith.addi %116, %57 : vector<1x256xi32>
    %118 = vector.shape_cast %117 : vector<1x256xi32> to vector<1x256xi32>
    %119 = vector.broadcast %118 : vector<1x256xi32> to vector<4x256xi32>
    %c0_i32_29 = arith.constant 0 : i32
    %120 = vector.broadcast %c0_i32_29 : i32 to vector<4x256xi32>
    %121 = arith.cmpi slt, %119, %120 : vector<4x256xi32>
    %c256_i32_30 = arith.constant 256 : i32
    %122 = vector.broadcast %c256_i32_30 : i32 to vector<4x256xi32>
    %123 = arith.addi %119, %122 : vector<4x256xi32>
    %124 = arith.select %121, %123, %119 : vector<4x256xi1>, vector<4x256xi32>
    %125 = vector.shape_cast %124 : vector<4x256xi32> to vector<4x256x1xi32>
    %126 = vector.shape_cast %125 : vector<4x256x1xi32> to vector<4x256xi32>
    %127 = tpu.dynamic_gather %80[%126] in [1] : vector<4x256xf32>, vector<4x256xi32> -> vector<4x256xf32>
    %128 = vector.broadcast %114 : vector<1x256xf32> to vector<4x256xf32>
    %129 = arith.mulf %128, %127 : vector<4x256xf32>
    %130 = arith.addf %113, %129 : vector<4x256xf32>
    %131 = arith.mulf %50, %51 : vector<1x256xf32>
    %c16_i32_31 = arith.constant 16 : i32
    %132 = vector.broadcast %c16_i32_31 : i32 to vector<1x256xi32>
    %133 = arith.muli %73, %132 : vector<1x256xi32>
    %134 = arith.addi %133, %63 : vector<1x256xi32>
    %135 = vector.shape_cast %134 : vector<1x256xi32> to vector<1x256xi32>
    %136 = vector.broadcast %135 : vector<1x256xi32> to vector<4x256xi32>
    %c0_i32_32 = arith.constant 0 : i32
    %137 = vector.broadcast %c0_i32_32 : i32 to vector<4x256xi32>
    %138 = arith.cmpi slt, %136, %137 : vector<4x256xi32>
    %c256_i32_33 = arith.constant 256 : i32
    %139 = vector.broadcast %c256_i32_33 : i32 to vector<4x256xi32>
    %140 = arith.addi %136, %139 : vector<4x256xi32>
    %141 = arith.select %138, %140, %136 : vector<4x256xi1>, vector<4x256xi32>
    %142 = vector.shape_cast %141 : vector<4x256xi32> to vector<4x256x1xi32>
    %143 = vector.shape_cast %142 : vector<4x256x1xi32> to vector<4x256xi32>
    %144 = tpu.dynamic_gather %80[%143] in [1] : vector<4x256xf32>, vector<4x256xi32> -> vector<4x256xf32>
    %145 = vector.broadcast %131 : vector<1x256xf32> to vector<4x256xf32>
    %146 = arith.mulf %145, %144 : vector<4x256xf32>
    %147 = arith.addf %130, %146 : vector<4x256xf32>
    %148 = arith.truncf %147 : vector<4x256xf32> to vector<4x256xbf16>
    %c0_34 = arith.constant 0 : index
    %c0_35 = arith.constant 0 : index
    %c0_36 = arith.constant 0 : index
    %149 = vector.load %arg5[%c0_34, %c0_35, %c0_36] : memref<1x4x256xbf16, #tpu.memory_space<vmem>>, vector<1x4x256xbf16>
    %150 = vector.shape_cast %149 : vector<1x4x256xbf16> to vector<4x256xbf16>
    %151 = vector.shape_cast %148 : vector<4x256xbf16> to vector<1x4x256xbf16>
    tpu.vector_store %arg5[%c0_34, %c0_35, %c0_36], %151 {strides = array<i32>} : memref<1x4x256xbf16, #tpu.memory_space<vmem>>, vector<1x4x256xbf16>,
    return
  }
  func.func @transform_0(%arg0: i32, %arg1: memref<2x1xf32, #tpu.memory_space<smem>>, %arg2: memref<2x1xf32, #tpu.memory_space<smem>>, %arg3: memref<2x1xf32, #tpu.memory_space<smem>>) -> (i32, i32, i32) {
    %c0_i32 = arith.constant 0 : i32
    %c0_i32_0 = arith.constant 0 : i32
    %c0_i32_1 = arith.constant 0 : i32
    return %arg0, %c0_i32, %c0_i32_0 : i32, i32, i32
  }
  func.func @transform_1(%arg0: i32, %arg1: memref<2x1xf32, #tpu.memory_space<smem>>, %arg2: memref<2x1xf32, #tpu.memory_space<smem>>, %arg3: memref<2x1xf32, #tpu.memory_space<smem>>) -> (i32, i32, i32) {
    %c0_i32 = arith.constant 0 : i32
    %c0_i32_0 = arith.constant 0 : i32
    %c0_i32_1 = arith.constant 0 : i32
    return %arg0, %c0_i32, %c0_i32_0 : i32, i32, i32
  }
}

module attributes {stable_mosaic.version = 11 : i64} {
  func.func @_undistort_onehot_kernel(%arg0: i32, %arg1: memref<2x1xf32, #tpu.memory_space<smem>>, %arg2: memref<2x1xf32, #tpu.memory_space<smem>>, %arg3: memref<2x1xf32, #tpu.memory_space<smem>>, %arg4: memref<1x4x256xbf16, #tpu.memory_space<vmem>>, %arg5: memref<1x4x256xbf16, #tpu.memory_space<vmem>>) attributes {dimension_semantics = [#tpu.dimension_semantics<parallel>], iteration_bounds = array<i64: 2>, scalar_prefetch = 3 : i64, scratch_operands = 0 : i64, tpu.core_type = #tpu.core_type<tc>, window_params = [{transform_indices = @transform_0, window_bounds = array<i64: 1, 4, 256>}, {transform_indices = @transform_1, window_bounds = array<i64: 1, 4, 256>}]} {
    %0 = arith.index_cast %arg0 : i32 to index
    %c0 = arith.constant 0 : index
    %1 = memref.load %arg1[%0, %c0] : memref<2x1xf32, #tpu.memory_space<smem>>
    %2 = arith.index_cast %arg0 : i32 to index
    %c0_0 = arith.constant 0 : index
    %3 = memref.load %arg2[%2, %c0_0] : memref<2x1xf32, #tpu.memory_space<smem>>
    %4 = arith.index_cast %arg0 : i32 to index
    %c0_1 = arith.constant 0 : index
    %5 = memref.load %arg3[%4, %c0_1] : memref<2x1xf32, #tpu.memory_space<smem>>
    %6 = tpu.iota {dimensions = array<i32: 1>} : vector<1x256xi32>
    %c4_i32 = arith.constant 4 : i32
    %7 = vector.broadcast %c4_i32 : i32 to vector<1x256xi32>
    %8 = arith.shrsi %6, %7 : vector<1x256xi32>
    %c15_i32 = arith.constant 15 : i32
    %9 = vector.broadcast %c15_i32 : i32 to vector<1x256xi32>
    %10 = arith.andi %6, %9 : vector<1x256xi32>
    %11 = arith.sitofp %10 : vector<1x256xi32> to vector<1x256xf32>
    %12 = arith.sitofp %8 : vector<1x256xi32> to vector<1x256xf32>
    %13 = vector.broadcast %3 : f32 to vector<1x256xf32>
    %14 = arith.subf %11, %13 : vector<1x256xf32>
    %cst = arith.constant 6.250000e-02 : f32
    %15 = vector.broadcast %cst : f32 to vector<1x256xf32>
    %16 = arith.mulf %14, %15 : vector<1x256xf32>
    %cst_2 = arith.constant 5.000000e-01 : f32
    %17 = vector.broadcast %cst_2 : f32 to vector<1x256xf32>
    %18 = arith.subf %16, %17 : vector<1x256xf32>
    %19 = vector.broadcast %5 : f32 to vector<1x256xf32>
    %20 = arith.subf %12, %19 : vector<1x256xf32>
    %cst_3 = arith.constant 6.250000e-02 : f32
    %21 = vector.broadcast %cst_3 : f32 to vector<1x256xf32>
    %22 = arith.mulf %20, %21 : vector<1x256xf32>
    %cst_4 = arith.constant 5.000000e-01 : f32
    %23 = vector.broadcast %cst_4 : f32 to vector<1x256xf32>
    %24 = arith.subf %22, %23 : vector<1x256xf32>
    %25 = arith.mulf %18, %18 : vector<1x256xf32>
    %26 = arith.mulf %24, %24 : vector<1x256xf32>
    %27 = arith.addf %25, %26 : vector<1x256xf32>
    %28 = vector.broadcast %1 : f32 to vector<1x256xf32>
    %29 = arith.mulf %28, %27 : vector<1x256xf32>
    %cst_5 = arith.constant 1.000000e+00 : f32
    %30 = vector.broadcast %cst_5 : f32 to vector<1x256xf32>
    %31 = arith.subf %30, %29 : vector<1x256xf32>
    %cst_6 = arith.constant 1.000000e+00 : f32
    %32 = vector.broadcast %cst_6 : f32 to vector<1x256xf32>
    %33 = arith.divf %32, %31 : vector<1x256xf32>
    %34 = arith.mulf %18, %33 : vector<1x256xf32>
    %cst_7 = arith.constant 5.000000e-01 : f32
    %35 = vector.broadcast %cst_7 : f32 to vector<1x256xf32>
    %36 = arith.addf %34, %35 : vector<1x256xf32>
    %cst_8 = arith.constant 1.600000e+01 : f32
    %37 = vector.broadcast %cst_8 : f32 to vector<1x256xf32>
    %38 = arith.mulf %36, %37 : vector<1x256xf32>
    %39 = vector.broadcast %3 : f32 to vector<1x256xf32>
    %40 = arith.addf %38, %39 : vector<1x256xf32>
    %41 = arith.mulf %24, %33 : vector<1x256xf32>
    %cst_9 = arith.constant 5.000000e-01 : f32
    %42 = vector.broadcast %cst_9 : f32 to vector<1x256xf32>
    %43 = arith.addf %41, %42 : vector<1x256xf32>
    %cst_10 = arith.constant 1.600000e+01 : f32
    %44 = vector.broadcast %cst_10 : f32 to vector<1x256xf32>
    %45 = arith.mulf %43, %44 : vector<1x256xf32>
    %46 = vector.broadcast %5 : f32 to vector<1x256xf32>
    %47 = arith.addf %45, %46 : vector<1x256xf32>
    %48 = math.floor %40 : vector<1x256xf32>
    %49 = math.floor %47 : vector<1x256xf32>
    %50 = arith.subf %40, %48 : vector<1x256xf32>
    %51 = arith.subf %47, %49 : vector<1x256xf32>
    %52 = arith.fptosi %48 : vector<1x256xf32> to vector<1x256xi32>
    %53 = arith.fptosi %49 : vector<1x256xf32> to vector<1x256xi32>
    %c0_i32 = arith.constant 0 : i32
    %c15_i32_11 = arith.constant 15 : i32
    %54 = vector.broadcast %c0_i32 : i32 to vector<1x256xi32>
    %55 = arith.maxsi %54, %52 : vector<1x256xi32>
    %56 = vector.broadcast %c15_i32_11 : i32 to vector<1x256xi32>
    %57 = arith.minsi %56, %55 : vector<1x256xi32>
    %c1_i32 = arith.constant 1 : i32
    %58 = vector.broadcast %c1_i32 : i32 to vector<1x256xi32>
    %59 = arith.addi %52, %58 : vector<1x256xi32>
    %c0_i32_12 = arith.constant 0 : i32
    %c15_i32_13 = arith.constant 15 : i32
    %60 = vector.broadcast %c0_i32_12 : i32 to vector<1x256xi32>
    %61 = arith.maxsi %60, %59 : vector<1x256xi32>
    %62 = vector.broadcast %c15_i32_13 : i32 to vector<1x256xi32>
    %63 = arith.minsi %62, %61 : vector<1x256xi32>
    %c0_i32_14 = arith.constant 0 : i32
    %c15_i32_15 = arith.constant 15 : i32
    %64 = vector.broadcast %c0_i32_14 : i32 to vector<1x256xi32>
    %65 = arith.maxsi %64, %53 : vector<1x256xi32>
    %66 = vector.broadcast %c15_i32_15 : i32 to vector<1x256xi32>
    %67 = arith.minsi %66, %65 : vector<1x256xi32>
    %c1_i32_16 = arith.constant 1 : i32
    %68 = vector.broadcast %c1_i32_16 : i32 to vector<1x256xi32>
    %69 = arith.addi %53, %68 : vector<1x256xi32>
    %c0_i32_17 = arith.constant 0 : i32
    %c15_i32_18 = arith.constant 15 : i32
    %70 = vector.broadcast %c0_i32_17 : i32 to vector<1x256xi32>
    %71 = arith.maxsi %70, %69 : vector<1x256xi32>
    %72 = vector.broadcast %c15_i32_18 : i32 to vector<1x256xi32>
    %73 = arith.minsi %72, %71 : vector<1x256xi32>
    %cst_19 = arith.constant 1.000000e+00 : f32
    %74 = vector.broadcast %cst_19 : f32 to vector<1x256xf32>
    %75 = arith.subf %74, %50 : vector<1x256xf32>
    %cst_20 = arith.constant 1.000000e+00 : f32
    %76 = vector.broadcast %cst_20 : f32 to vector<1x256xf32>
    %77 = arith.subf %76, %51 : vector<1x256xf32>
    %78 = tpu.iota {dimensions = array<i32: 0>} : vector<256x256xi32>
    %79 = arith.mulf %75, %77 : vector<1x256xf32>
    %c16_i32 = arith.constant 16 : i32
    %80 = vector.broadcast %c16_i32 : i32 to vector<1x256xi32>
    %81 = arith.muli %67, %80 : vector<1x256xi32>
    %82 = arith.addi %81, %57 : vector<1x256xi32>
    %83 = vector.broadcast %82 : vector<1x256xi32> to vector<256x256xi32>
    %84 = arith.cmpi eq, %78, %83 : vector<256x256xi32>
    %85 = arith.extui %84 : vector<256x256xi1> to vector<256x256xi32>
    %86 = arith.sitofp %85 : vector<256x256xi32> to vector<256x256xf32>
    %87 = vector.broadcast %79 : vector<1x256xf32> to vector<256x256xf32>
    %88 = arith.mulf %87, %86 : vector<256x256xf32>
    %89 = arith.mulf %50, %77 : vector<1x256xf32>
    %c16_i32_21 = arith.constant 16 : i32
    %90 = vector.broadcast %c16_i32_21 : i32 to vector<1x256xi32>
    %91 = arith.muli %67, %90 : vector<1x256xi32>
    %92 = arith.addi %91, %63 : vector<1x256xi32>
    %93 = vector.broadcast %92 : vector<1x256xi32> to vector<256x256xi32>
    %94 = arith.cmpi eq, %78, %93 : vector<256x256xi32>
    %95 = arith.extui %94 : vector<256x256xi1> to vector<256x256xi32>
    %96 = arith.sitofp %95 : vector<256x256xi32> to vector<256x256xf32>
    %97 = vector.broadcast %89 : vector<1x256xf32> to vector<256x256xf32>
    %98 = arith.mulf %97, %96 : vector<256x256xf32>
    %99 = arith.addf %88, %98 : vector<256x256xf32>
    %100 = arith.mulf %75, %51 : vector<1x256xf32>
    %c16_i32_22 = arith.constant 16 : i32
    %101 = vector.broadcast %c16_i32_22 : i32 to vector<1x256xi32>
    %102 = arith.muli %73, %101 : vector<1x256xi32>
    %103 = arith.addi %102, %57 : vector<1x256xi32>
    %104 = vector.broadcast %103 : vector<1x256xi32> to vector<256x256xi32>
    %105 = arith.cmpi eq, %78, %104 : vector<256x256xi32>
    %106 = arith.extui %105 : vector<256x256xi1> to vector<256x256xi32>
    %107 = arith.sitofp %106 : vector<256x256xi32> to vector<256x256xf32>
    %108 = vector.broadcast %100 : vector<1x256xf32> to vector<256x256xf32>
    %109 = arith.mulf %108, %107 : vector<256x256xf32>
    %110 = arith.addf %99, %109 : vector<256x256xf32>
    %111 = arith.mulf %50, %51 : vector<1x256xf32>
    %c16_i32_23 = arith.constant 16 : i32
    %112 = vector.broadcast %c16_i32_23 : i32 to vector<1x256xi32>
    %113 = arith.muli %73, %112 : vector<1x256xi32>
    %114 = arith.addi %113, %63 : vector<1x256xi32>
    %115 = vector.broadcast %114 : vector<1x256xi32> to vector<256x256xi32>
    %116 = arith.cmpi eq, %78, %115 : vector<256x256xi32>
    %117 = arith.extui %116 : vector<256x256xi1> to vector<256x256xi32>
    %118 = arith.sitofp %117 : vector<256x256xi32> to vector<256x256xf32>
    %119 = vector.broadcast %111 : vector<1x256xf32> to vector<256x256xf32>
    %120 = arith.mulf %119, %118 : vector<256x256xf32>
    %121 = arith.addf %110, %120 : vector<256x256xf32>
    %c0_24 = arith.constant 0 : index
    %c0_25 = arith.constant 0 : index
    %c0_26 = arith.constant 0 : index
    %122 = vector.load %arg4[%c0_24, %c0_25, %c0_26] : memref<1x4x256xbf16, #tpu.memory_space<vmem>>, vector<1x4x256xbf16>
    %123 = vector.shape_cast %122 : vector<1x4x256xbf16> to vector<4x256xbf16>
    %124 = arith.extf %123 : vector<4x256xbf16> to vector<4x256xf32>
    %cst_27 = arith.constant dense<0.000000e+00> : vector<4x256xf32>
    %125 = tpu.matmul %124, %121, %cst_27 {dimension_numbers = #tpu.dot_dimension_numbers<[1], [0], [0], [1], [0, 0, 1, 1], [], []>} : vector<4x256xf32>, vector<256x256xf32>, vector<4x256xf32> -> vector<4x256xf32>
    %126 = arith.truncf %125 : vector<4x256xf32> to vector<4x256xbf16>
    %c0_28 = arith.constant 0 : index
    %c0_29 = arith.constant 0 : index
    %c0_30 = arith.constant 0 : index
    %127 = vector.load %arg5[%c0_28, %c0_29, %c0_30] : memref<1x4x256xbf16, #tpu.memory_space<vmem>>, vector<1x4x256xbf16>
    %128 = vector.shape_cast %127 : vector<1x4x256xbf16> to vector<4x256xbf16>
    %129 = vector.shape_cast %126 : vector<4x256xbf16> to vector<1x4x256xbf16>
    tpu.vector_store %arg5[%c0_28, %c0_29, %c0_30], %129 {strides = array<i32>} : memref<1x4x256xbf16, #tpu.memory_space<vmem>>, vector<1x4x256xbf16>,
    return
  }
  func.func @transform_0(%arg0: i32, %arg1: memref<2x1xf32, #tpu.memory_space<smem>>, %arg2: memref<2x1xf32, #tpu.memory_space<smem>>, %arg3: memref<2x1xf32, #tpu.memory_space<smem>>) -> (i32, i32, i32) {
    %c0_i32 = arith.constant 0 : i32
    %c0_i32_0 = arith.constant 0 : i32
    %c0_i32_1 = arith.constant 0 : i32
    return %arg0, %c0_i32, %c0_i32_0 : i32, i32, i32
  }
  func.func @transform_1(%arg0: i32, %arg1: memref<2x1xf32, #tpu.memory_space<smem>>, %arg2: memref<2x1xf32, #tpu.memory_space<smem>>, %arg3: memref<2x1xf32, #tpu.memory_space<smem>>) -> (i32, i32, i32) {
    %c0_i32 = arith.constant 0 : i32
    %c0_i32_0 = arith.constant 0 : i32
    %c0_i32_1 = arith.constant 0 : i32
    return %arg0, %c0_i32, %c0_i32_0 : i32, i32, i32
  }
}

</mosaic_0001>

<llo_original>
// kernel: tpu_custom_call.1
$region0: #{tpu_custom_call.1}
  #allocation0 [shape = 'u32[]', space=smem, size = 0x4, offset = 0x4, fixed_abs, tag = 'smem constant byte address 0x4 - core index']
  #allocation1 [shape = 'u32[144,128]{1,0:T(1,128)}', space=vmem, size = 0x12000, scoped, tag = 'internal scratch']
  #allocation2 [shape = 's32[1]{0}', space=sflag, size = 0x4, scoped, tag = 'scoped memory for tpu_custom_call.1']
  #allocation3 [shape = 'u8[1024]{0}', space=smem, size = 0x400, scoped, tag = 'prefetched SMEM operand 0']
  #allocation4 [shape = 'u8[1024]{0}', space=smem, size = 0x400, scoped, tag = 'prefetched SMEM operand 1']
  #allocation5 [shape = 'u8[1024]{0}', space=smem, size = 0x400, scoped, tag = 'prefetched SMEM operand 2']
  %s0 = inlined_call_operand.vmem [shape: f32[2,1], index: 0, kind: input, shape index: {}]
  %s1 = inlined_call_operand.vmem [shape: f32[2,1], index: 1, kind: input, shape index: {}]
  %s2 = inlined_call_operand.vmem [shape: f32[2,1], index: 2, kind: input, shape index: {}]
  %s3 = inlined_call_operand.vmem [shape: bf16[2,4,256], index: 3, kind: input, shape index: {}]
  %s4 = inlined_call_operand.hbm [shape: bf16[2,4,256], index: 4, kind: output, shape index: {}]
  %s5 = sld [smem:[#allocation0]]
  $region37: #{tpu_custom_call.1} parent=0
    _
  %s7 = ssub.s32 1, %s5
  %s8 = scalar_select 0, %s7, %s5
  %s9 = sshll.u32 %s0, 4
  %s10 = int_to_ptr.vmem [resolvable:$true] %s9
  %12 = dma.vmem_to_smem %s10, 32, [#allocation3], [#allocation2]
  %s13 = sshll.u32 %s1, 4
  %s14 = int_to_ptr.vmem [resolvable:$true] %s13
  %16 = dma.vmem_to_smem %s14, 32, [#allocation4], [#allocation2]
  %s17 = sshll.u32 %s2, 4
  %s18 = int_to_ptr.vmem [resolvable:$true] %s17
  %20 = dma.vmem_to_smem %s18, 32, [#allocation5], [#allocation2]
  %21 = dma.done [#allocation2], 96
  %22 = sfence
  $region1: #{tpu_custom_call.1} parent=0
    #allocation6 [shape = 'u8[4096]{0}', space=vmem, size = 0x1000, scoped, tag = 'output window, operand 0']
    #allocation7 [shape = 's32[2]{0}', space=sflag, size = 0x8, scoped, tag = 'scoped memory for tpu_custom_call.1']
    %23 = vsyncpa [#allocation7], 0
    %s24 = scalar_lea.sflag [#allocation7], 1
    %25 = vsyncpa %s24, 0
    loop: start=0, step=1, limit=4
    $region2: #{tpu_custom_call.1} parent=1 // loop_pre_header
      _
    $region3: #{tpu_custom_call.1} parent=1 // loop_header
      %s27 = sphi 0, %s31
      %p28 = scmp.ge.s32.totalorder %s27, 4
      %s37 = sphi 0, %s39
      %s40 = sphi 0, %s37
      %s41 = sphi 0, %s40
      %s57 = sphi 0, %s41
      %s63 = sphi 0, %s65
      %s66 = sphi 0, %s63
      %s67 = sphi 0, %s66
      %s83 = sphi 0, %s67
    $region4: #{tpu_custom_call.1} parent=1 // loop_header_branch
      %30 = sbr.rel (%p28) target = $region8
    $region5: #{tpu_custom_call.1} parent=1 // loop_body
      %s32 = ssub.s32 %s27, 1
      %s33 = ssub.s32 %s27, 2
      %s34 = sadd.s32 %s27, 1
      %s35 = ssub.s32 %s27, %s34
      %p36 = scmp.eq.s32.totalorder %s35, 0
      %s38 = sadd.s32 %s37, 1
      %s39 = scalar_select %p36, %s37, %s38
      %p42 = pneg %p36
      %p43 = scmp.eq.s32.totalorder %s27, 1
      %p44 = por %p42, %p43
      %p45 = scmp.ne.s32.totalorder %s37, %s40
      %p46 = scmp.eq.s32.totalorder %s27, 0
      %p47 = por %p45, %p46
      %p48 = scmp.ne.s32.totalorder %s37, %s40
      %p49 = scmp.eq.s32.totalorder %s32, 1
      %p50 = por %p48, %p49
      %p51 = scmp.ne.s32.totalorder %s40, %s41
      %p52 = scmp.eq.s32.totalorder %s32, 0
      %p53 = por %p51, %p52
      %p54 = scmp.ne.s32.totalorder %s40, %s41
      %p55 = scmp.eq.s32.totalorder %s33, 1
      %p56 = por %p54, %p55
      %p58 = scmp.ne.s32.totalorder %s41, %s57
      %p59 = scmp.eq.s32.totalorder %s33, 0
      %p60 = por %p58, %p59
      %s61 = ssub.s32 %s27, %s34
      %p62 = scmp.eq.s32.totalorder %s61, 0
      %s64 = sadd.s32 %s63, 1
      %s65 = scalar_select %p62, %s63, %s64
      %p68 = pneg %p62
      %p69 = scmp.eq.s32.totalorder %s27, 1
      %p70 = por %p68, %p69
      %p71 = scmp.ne.s32.totalorder %s63, %s66
      %p72 = scmp.eq.s32.totalorder %s27, 0
      %p73 = por %p71, %p72
      %p74 = scmp.ne.s32.totalorder %s63, %s66
      %p75 = scmp.eq.s32.totalorder %s32, 1
      %p76 = por %p74, %p75
      %p77 = scmp.ne.s32.totalorder %s66, %s67
      %p78 = scmp.eq.s32.totalorder %s32, 0
      %p79 = por %p77, %p78
      %p80 = scmp.ne.s32.totalorder %s66, %s67
      %p81 = scmp.eq.s32.totalorder %s33, 1
      %p82 = por %p80, %p81
      %p84 = scmp.ne.s32.totalorder %s67, %s83
      %p85 = scmp.eq.s32.totalorder %s33, 0
      %p86 = por %p84, %p85
      %p87 = scmp.le.s32.totalorder 1, %s27
      %p88 = scmp.lt.s32.totalorder %s27, 3
      %p89 = pnand %p87, %p88
      %p90 = pneg %p89
      // Predicated region
      $region9: #{tpu_custom_call.1} parent=5 // pred_check
        _
      $region10: #{tpu_custom_call.1} parent=5 // pred_check_branch
        %92 = sbr.rel (%p89) target = $region12
      $region11: #{tpu_custom_call.1} parent=5 // pred_region
        %s93 = ssub.s32 %s27, 1
      $region12: #{tpu_custom_call.1} parent=5 // pred_fallthru
        _
      %p94 = scmp.lt.s32.totalorder %s27, 2
      // Predicated region
      $region13: #{tpu_custom_call.1} parent=5 // pred_check
        %p95 = pneg %p94
      $region14: #{tpu_custom_call.1} parent=5 // pred_check_branch
        %97 = sbr.rel (%p95) target = $region16
      $region15: #{tpu_custom_call.1} parent=5 // pred_region
        // Predicated region
        $region17: #{tpu_custom_call.1} parent=15 // pred_check
          %p98 = pneg %p47
        $region18: #{tpu_custom_call.1} parent=15 // pred_check_branch
          %100 = sbr.rel (%p98) target = $region20
        $region19: #{tpu_custom_call.1} parent=15 // pred_region
          %p101 = scmp.lt.s32.totalorder %s27, 1
          %s102 = scalar_select %p101, %s27, 1
          %s103 = smul.addr %s102, 2
          %s104 = smul.addr %s103, 2
          %s105 = scalar_lea.vmem %s3, %s104
        $region20: #{tpu_custom_call.1} parent=15 // pred_fallthru
          _
      $region16: #{tpu_custom_call.1} parent=5 // pred_fallthru
        _
      %p106 = scmp.le.s32.totalorder 1, %s27
      %p107 = scmp.lt.s32.totalorder %s27, 3
      %p108 = pnand %p106, %p107
      %p109 = pneg %p108
      // Predicated region
      $region21: #{tpu_custom_call.1} parent=5 // pred_check
        _
      $region22: #{tpu_custom_call.1} parent=5 // pred_check_branch
        %111 = sbr.rel (%p108) target = $region24
      $region23: #{tpu_custom_call.1} parent=5 // pred_region
        %s112 = ssub.s32 %s27, 1
        %p113 = scmp.lt.s32.totalorder %s32, 1
        %s114 = scalar_select %p113, %s32, 1
        %s115 = smul.addr %s114, 2
        %s116 = smul.addr %s115, 2
        %s117 = scalar_lea.vmem %s3, %s116
        %p118 = pneg %p53
        %p119 = pneg %p50
        %p120 = pneg %p79
        %p121 = pneg %p76
        %s122 = sand.u32 %s66, 1
        %s123 = scalar_lea.sflag [#allocation7], %s122
        %s124 = sand.u32 %s66, 1
        %s125 = smul.addr %s124, 4
        %s126 = scalar_lea.vmem [#allocation6], %s125
        %p127 = scmp.lt.s32.totalorder %s32, 1
        %s128 = scalar_select %p127, %s32, 1
        %s129 = smul.addr %s128, 2
        %s130 = smul.addr %s129, 2
        %s131 = scalar_lea.vmem %s3, %s130
        %s132 = smul.u32 %s32, 128
        %s133 = sld [smem:[#allocation3 + %s132]]
        %s134 = sld [smem:[#allocation4 + %s132]]
        %s135 = sld [smem:[#allocation5 + %s132]]
        %v136 = vlaneseq
        %v137 = vand.u32 %v136, 127
        %v138 = vadd.s32 %v137, 128
        %v139 = vshra.s32 %v137, 4
        %v140 = vshra.s32 %v138, 4
        %v141 = vand.u32 %v137, 15
        %v142 = vand.u32 %v138, 15
        %v143 = vcvt.s32.f32 %v141
        %v144 = vcvt.s32.f32 %v142
        %v145 = vcvt.s32.f32 %v139
        %v146 = vcvt.s32.f32 %v140
        %v147 = vstv %s134
        %v148 = vsub.f32 %v143, %v147
        %v149 = vsub.f32 %v144, %v147
        %v150 = vmul.f32 %v148, 0.0625
        %v151 = vmul.f32 %v149, 0.0625
        %v152 = vsub.f32 %v150, 0.5
        %v153 = vsub.f32 %v151, 0.5
        %v154 = vstv %s135
        %v155 = vsub.f32 %v145, %v154
        %v156 = vsub.f32 %v146, %v154
        %v157 = vmul.f32 %v155, 0.0625
        %v158 = vmul.f32 %v156, 0.0625
        %v159 = vsub.f32 %v157, 0.5
        %v160 = vsub.f32 %v158, 0.5
        %v161 = vmul.f32 %v152, %v152
        %v162 = vmul.f32 %v153, %v153
        %v163 = vmul.f32 %v159, %v159
        %v164 = vmul.f32 %v160, %v160
        %v165 = vadd.f32 %v161, %v163
        %v166 = vadd.f32 %v162, %v164
        %v167 = vstv %s133
        %v168 = vmul.f32 %v167, %v165
        %v169 = vmul.f32 %v167, %v166
        %v170 = vsub.f32 1.0, %v168
        %v171 = vsub.f32 1.0, %v169
        %v172 = vrcp.pop %v170
        %v173 = vmul.f32 1.0, %v172
        %v174 = vrcp.pop %v171
        %v175 = vmul.f32 1.0, %v174
        %v176 = vmul.f32 %v152, %v173
        %v177 = vmul.f32 %v153, %v175
        %v178 = vadd.f32 %v176, 0.5
        %v179 = vadd.f32 %v177, 0.5
        %v180 = vmul.f32 %v178, 16.0
        %v181 = vmul.f32 %v179, 16.0
        %v182 = vadd.f32 %v180, %v147
        %v183 = vadd.f32 %v181, %v147
        %v184 = vmul.f32 %v159, %v173
        %v185 = vmul.f32 %v160, %v175
        %v186 = vadd.f32 %v184, 0.5
        %v187 = vadd.f32 %v185, 0.5
        %v188 = vmul.f32 %v186, 16.0
        %v189 = vmul.f32 %v187, 16.0
        %v190 = vadd.f32 %v188, %v154
        %v191 = vadd.f32 %v189, %v154
        %v192 = vfloor.f32 %v182
        %v193 = vfloor.f32 %v183
        %v194 = vfloor.f32 %v190
        %v195 = vfloor.f32 %v191
        %v196 = vsub.f32 %v182, %v192
        %v197 = vsub.f32 %v183, %v193
        %v198 = vsub.f32 %v190, %v194
        %v199 = vsub.f32 %v191, %v195
        %v200 = vcvt.f32.s32.to.zero.pseudo %v192
        %v201 = vcvt.f32.s32.to.zero.pseudo %v193
        %v202 = vcvt.f32.s32.to.zero.pseudo %v194
        %v203 = vcvt.f32.s32.to.zero.pseudo %v195
        %vm204 = vcmp.gt.s32.totalorder %v200, 0
        %v205 = vsel %vm204, %v200, 0
        %vm206 = vcmp.gt.s32.totalorder %v201, 0
        %v207 = vsel %vm206, %v201, 0
        %vm208 = vcmp.lt.s32.totalorder %v205, 15
        %v209 = vsel %vm208, %v205, 15
        %vm210 = vcmp.lt.s32.totalorder %v207, 15
        %v211 = vsel %vm210, %v207, 15
        %v212 = vadd.s32 %v200, 1
        %v213 = vadd.s32 %v201, 1
        %vm214 = vcmp.gt.s32.totalorder %v212, 0
        %v215 = vsel %vm214, %v212, 0
        %vm216 = vcmp.gt.s32.totalorder %v213, 0
        %v217 = vsel %vm216, %v213, 0
        %vm218 = vcmp.lt.s32.totalorder %v215, 15
        %v219 = vsel %vm218, %v215, 15
        %vm220 = vcmp.lt.s32.totalorder %v217, 15
        %v221 = vsel %vm220, %v217, 15
        %vm222 = vcmp.gt.s32.totalorder %v202, 0
        %v223 = vsel %vm222, %v202, 0
        %vm224 = vcmp.gt.s32.totalorder %v203, 0
        %v225 = vsel %vm224, %v203, 0
        %vm226 = vcmp.lt.s32.totalorder %v223, 15
        %v227 = vsel %vm226, %v223, 15
        %vm228 = vcmp.lt.s32.totalorder %v225, 15
        %v229 = vsel %vm228, %v225, 15
        %v230 = vadd.s32 %v202, 1
        %v231 = vadd.s32 %v203, 1
        %vm232 = vcmp.gt.s32.totalorder %v230, 0
        %v233 = vsel %vm232, %v230, 0
        %vm234 = vcmp.gt.s32.totalorder %v231, 0
        %v235 = vsel %vm234, %v231, 0
        %vm236 = vcmp.lt.s32.totalorder %v233, 15
        %v237 = vsel %vm236, %v233, 15
        %vm238 = vcmp.lt.s32.totalorder %v235, 15
        %v239 = vsel %vm238, %v235, 15
        %v240 = vsub.f32 1.0, %v196
        %v241 = vsub.f32 1.0, %v197
        %v242 = vsub.f32 1.0, %v198
        %v243 = vsub.f32 1.0, %v199
        %v244 = vlaneseq
        %v245 = vshrl.u32 %v244, 7
        %v246 = vadd.s32 %v245, 8
        %v247 = vadd.s32 %v245, 16
        %v248 = vadd.s32 %v245, 24
        %v249 = vadd.s32 %v245, 32
        %v250 = vadd.s32 %v245, 40
        %v251 = vadd.s32 %v245, 48
        %v252 = vadd.s32 %v245, 56
        %v253 = vadd.s32 %v245, 64
        %v254 = vadd.s32 %v245, 72
        %v255 = vadd.s32 %v245, 80
        %v256 = vadd.s32 %v245, 88
        %v257 = vadd.s32 %v245, 96
        %v258 = vadd.s32 %v245, 104
        %v259 = vadd.s32 %v245, 112
        %v260 = vadd.s32 %v245, 120
        %v261 = vadd.s32 %v245, 128
        %v262 = vadd.s32 %v245, 136
        %v263 = vadd.s32 %v245, 144
        %v264 = vadd.s32 %v245, 152
        %v265 = vadd.s32 %v245, 160
        %v266 = vadd.s32 %v245, 168
        %v267 = vadd.s32 %v245, 176
        %v268 = vadd.s32 %v245, 184
        %v269 = vadd.s32 %v245, 192
        %v270 = vadd.s32 %v245, 200
        %v271 = vadd.s32 %v245, 208
        %v272 = vadd.s32 %v245, 216
        %v273 = vadd.s32 %v245, 224
        %v274 = vadd.s32 %v245, 232
        %v275 = vadd.s32 %v245, 240
        %v276 = vadd.s32 %v245, 248
        %v277 = vmul.f32 %v240, %v242
        %v278 = vmul.f32 %v241, %v243
        %v279 = vmul.u32 %v227, 16
        %v280 = vmul.u32 %v229, 16
        %v281 = vadd.s32 %v279, %v209
        %v282 = vadd.s32 %v280, %v211
        %vm283 = vcmp.eq.s32.totalorder %v245, %v281
        %vm284 = vcmp.eq.s32.totalorder %v245, %v282
        %vm285 = vcmp.eq.s32.totalorder %v246, %v281
        %vm286 = vcmp.eq.s32.totalorder %v246, %v282
        %vm287 = vcmp.eq.s32.totalorder %v247, %v281
        %vm288 = vcmp.eq.s32.totalorder %v247, %v282
        %vm289 = vcmp.eq.s32.totalorder %v248, %v281
        %vm290 = vcmp.eq.s32.totalorder %v248, %v282
        %vm291 = vcmp.eq.s32.totalorder %v249, %v281
        %vm292 = vcmp.eq.s32.totalorder %v249, %v282
        %vm293 = vcmp.eq.s32.totalorder %v250, %v281
        %vm294 = vcmp.eq.s32.totalorder %v250, %v282
        %vm295 = vcmp.eq.s32.totalorder %v251, %v281
        %vm296 = vcmp.eq.s32.totalorder %v251, %v282
        %vm297 = vcmp.eq.s32.totalorder %v252, %v281
        %vm298 = vcmp.eq.s32.totalorder %v252, %v282
        %vm299 = vcmp.eq.s32.totalorder %v253, %v281
        %vm300 = vcmp.eq.s32.totalorder %v253, %v282
        %vm301 = vcmp.eq.s32.totalorder %v254, %v281
        %vm302 = vcmp.eq.s32.totalorder %v254, %v282
        %vm303 = vcmp.eq.s32.totalorder %v255, %v281
        %vm304 = vcmp.eq.s32.totalorder %v255, %v282
        %vm305 = vcmp.eq.s32.totalorder %v256, %v281
        %vm306 = vcmp.eq.s32.totalorder %v256, %v282
        %vm307 = vcmp.eq.s32.totalorder %v257, %v281
        %vm308 = vcmp.eq.s32.totalorder %v257, %v282
        %vm309 = vcmp.eq.s32.totalorder %v258, %v281
        %vm310 = vcmp.eq.s32.totalorder %v258, %v282
        %vm311 = vcmp.eq.s32.totalorder %v259, %v281
        %vm312 = vcmp.eq.s32.totalorder %v259, %v282
        %vm313 = vcmp.eq.s32.totalorder %v260, %v281
        %vm314 = vcmp.eq.s32.totalorder %v260, %v282
        %vm315 = vcmp.eq.s32.totalorder %v261, %v281
        %vm316 = vcmp.eq.s32.totalorder %v261, %v282
        %vm317 = vcmp.eq.s32.totalorder %v262, %v281
        %vm318 = vcmp.eq.s32.totalorder %v262, %v282
        %vm319 = vcmp.eq.s32.totalorder %v263, %v281
        %vm320 = vcmp.eq.s32.totalorder %v263, %v282
        %vm321 = vcmp.eq.s32.totalorder %v264, %v281
        %vm322 = vcmp.eq.s32.totalorder %v264, %v282
        %vm323 = vcmp.eq.s32.totalorder %v265, %v281
        %vm324 = vcmp.eq.s32.totalorder %v265, %v282
        %vm325 = vcmp.eq.s32.totalorder %v266, %v281
        %vm326 = vcmp.eq.s32.totalorder %v266, %v282
        %vm327 = vcmp.eq.s32.totalorder %v267, %v281
        %vm328 = vcmp.eq.s32.totalorder %v267, %v282
        %vm329 = vcmp.eq.s32.totalorder %v268, %v281
        %vm330 = vcmp.eq.s32.totalorder %v268, %v282
        %vm331 = vcmp.eq.s32.totalorder %v269, %v281
        %vm332 = vcmp.eq.s32.totalorder %v269, %v282
        %vm333 = vcmp.eq.s32.totalorder %v270, %v281
        %vm334 = vcmp.eq.s32.totalorder %v270, %v282
        %vm335 = vcmp.eq.s32.totalorder %v271, %v281
        %vm336 = vcmp.eq.s32.totalorder %v271, %v282
        %vm337 = vcmp.eq.s32.totalorder %v272, %v281
        %vm338 = vcmp.eq.s32.totalorder %v272, %v282
        %vm339 = vcmp.eq.s32.totalorder %v273, %v281
        %vm340 = vcmp.eq.s32.totalorder %v273, %v282
        %vm341 = vcmp.eq.s32.totalorder %v274, %v281
        %vm342 = vcmp.eq.s32.totalorder %v274, %v282
        %vm343 = vcmp.eq.s32.totalorder %v275, %v281
        %vm344 = vcmp.eq.s32.totalorder %v275, %v282
        %vm345 = vcmp.eq.s32.totalorder %v276, %v281
        %vm346 = vcmp.eq.s32.totalorder %v276, %v282
        %v347 = vsel %vm283, 1, 0
        %v348 = vsel %vm284, 1, 0
        %v349 = vsel %vm285, 1, 0
        %v350 = vsel %vm286, 1, 0
        %v351 = vsel %vm287, 1, 0
        %v352 = vsel %vm288, 1, 0
        %v353 = vsel %vm289, 1, 0
        %v354 = vsel %vm290, 1, 0
        %v355 = vsel %vm291, 1, 0
        %v356 = vsel %vm292, 1, 0
        %v357 = vsel %vm293, 1, 0
        %v358 = vsel %vm294, 1, 0
        %v359 = vsel %vm295, 1, 0
        %v360 = vsel %vm296, 1, 0
        %v361 = vsel %vm297, 1, 0
        %v362 = vsel %vm298, 1, 0
        %v363 = vsel %vm299, 1, 0
        %v364 = vsel %vm300, 1, 0
        %v365 = vsel %vm301, 1, 0
        %v366 = vsel %vm302, 1, 0
        %v367 = vsel %vm303, 1, 0
        %v368 = vsel %vm304, 1, 0
        %v369 = vsel %vm305, 1, 0
        %v370 = vsel %vm306, 1, 0
        %v371 = vsel %vm307, 1, 0
        %v372 = vsel %vm308, 1, 0
        %v373 = vsel %vm309, 1, 0
        %v374 = vsel %vm310, 1, 0
        %v375 = vsel %vm311, 1, 0
        %v376 = vsel %vm312, 1, 0
        %v377 = vsel %vm313, 1, 0
        %v378 = vsel %vm314, 1, 0
        %v379 = vsel %vm315, 1, 0
        %v380 = vsel %vm316, 1, 0
        %v381 = vsel %vm317, 1, 0
        %v382 = vsel %vm318, 1, 0
        %v383 = vsel %vm319, 1, 0
        %v384 = vsel %vm320, 1, 0
        %v385 = vsel %vm321, 1, 0
        %v386 = vsel %vm322, 1, 0
        %v387 = vsel %vm323, 1, 0
        %v388 = vsel %vm324, 1, 0
        %v389 = vsel %vm325, 1, 0
        %v390 = vsel %vm326, 1, 0
        %v391 = vsel %vm327, 1, 0
        %v392 = vsel %vm328, 1, 0
        %v393 = vsel %vm329, 1, 0
        %v394 = vsel %vm330, 1, 0
        %v395 = vsel %vm331, 1, 0
        %v396 = vsel %vm332, 1, 0
        %v397 = vsel %vm333, 1, 0
        %v398 = vsel %vm334, 1, 0
        %v399 = vsel %vm335, 1, 0
        %v400 = vsel %vm336, 1, 0
        %v401 = vsel %vm337, 1, 0
        %v402 = vsel %vm338, 1, 0
        %v403 = vsel %vm339, 1, 0
        %v404 = vsel %vm340, 1, 0
        %v405 = vsel %vm341, 1, 0
        %v406 = vsel %vm342, 1, 0
        %v407 = vsel %vm343, 1, 0
        %v408 = vsel %vm344, 1, 0
        %v409 = vsel %vm345, 1, 0
        %v410 = vsel %vm346, 1, 0
        %v411 = vcvt.s32.f32 %v347
        %v412 = vcvt.s32.f32 %v348
        %v413 = vcvt.s32.f32 %v349
        %v414 = vcvt.s32.f32 %v350
        %v415 = vcvt.s32.f32 %v351
        %v416 = vcvt.s32.f32 %v352
        %v417 = vcvt.s32.f32 %v353
        %v418 = vcvt.s32.f32 %v354
        %v419 = vcvt.s32.f32 %v355
        %v420 = vcvt.s32.f32 %v356
        %v421 = vcvt.s32.f32 %v357
        %v422 = vcvt.s32.f32 %v358
        %v423 = vcvt.s32.f32 %v359
        %v424 = vcvt.s32.f32 %v360
        %v425 = vcvt.s32.f32 %v361
        %v426 = vcvt.s32.f32 %v362
        %v427 = vcvt.s32.f32 %v363
        %v428 = vcvt.s32.f32 %v364
        %v429 = vcvt.s32.f32 %v365
        %v430 = vcvt.s32.f32 %v366
        %v431 = vcvt.s32.f32 %v367
        %v432 = vcvt.s32.f32 %v368
        %v433 = vcvt.s32.f32 %v369
        %v434 = vcvt.s32.f32 %v370
        %v435 = vcvt.s32.f32 %v371
        %v436 = vcvt.s32.f32 %v372
        %v437 = vcvt.s32.f32 %v373
        %v438 = vcvt.s32.f32 %v374
        %v439 = vcvt.s32.f32 %v375
        %v440 = vcvt.s32.f32 %v376
        %v441 = vcvt.s32.f32 %v377
        %v442 = vcvt.s32.f32 %v378
        %v443 = vcvt.s32.f32 %v379
        %v444 = vcvt.s32.f32 %v380
        %v445 = vcvt.s32.f32 %v381
        %v446 = vcvt.s32.f32 %v382
        %v447 = vcvt.s32.f32 %v383
        %v448 = vcvt.s32.f32 %v384
        %v449 = vcvt.s32.f32 %v385
        %v450 = vcvt.s32.f32 %v386
        %v451 = vcvt.s32.f32 %v387
        %v452 = vcvt.s32.f32 %v388
        %v453 = vcvt.s32.f32 %v389
        %v454 = vcvt.s32.f32 %v390
        %v455 = vcvt.s32.f32 %v391
        %v456 = vcvt.s32.f32 %v392
        %v457 = vcvt.s32.f32 %v393
        %v458 = vcvt.s32.f32 %v394
        %v459 = vcvt.s32.f32 %v395
        %v460 = vcvt.s32.f32 %v396
        %v461 = vcvt.s32.f32 %v397
        %v462 = vcvt.s32.f32 %v398
        %v463 = vcvt.s32.f32 %v399
        %v464 = vcvt.s32.f32 %v400
        %v465 = vcvt.s32.f32 %v401
        %v466 = vcvt.s32.f32 %v402
        %v467 = vcvt.s32.f32 %v403
        %v468 = vcvt.s32.f32 %v404
        %v469 = vcvt.s32.f32 %v405
        %v470 = vcvt.s32.f32 %v406
        %v471 = vcvt.s32.f32 %v407
        %v472 = vcvt.s32.f32 %v408
        %v473 = vcvt.s32.f32 %v409
        %v474 = vcvt.s32.f32 %v410
        %v475 = vmul.f32 %v277, %v411
        %v476 = vmul.f32 %v278, %v412
        %v477 = vmul.f32 %v277, %v413
        %v478 = vmul.f32 %v278, %v414
        %v479 = vmul.f32 %v277, %v415
        %v480 = vmul.f32 %v278, %v416
        %v481 = vmul.f32 %v277, %v417
        %v482 = vmul.f32 %v278, %v418
        %v483 = vmul.f32 %v277, %v419
        %v484 = vmul.f32 %v278, %v420
        %v485 = vmul.f32 %v277, %v421
        %v486 = vmul.f32 %v278, %v422
        %v487 = vmul.f32 %v277, %v423
        %v488 = vmul.f32 %v278, %v424
        %v489 = vmul.f32 %v277, %v425
        %v490 = vmul.f32 %v278, %v426
        %v491 = vmul.f32 %v277, %v427
        %v492 = vmul.f32 %v278, %v428
        %v493 = vmul.f32 %v277, %v429
        %v494 = vmul.f32 %v278, %v430
        %v495 = vmul.f32 %v277, %v431
        %v496 = vmul.f32 %v278, %v432
        %v497 = vmul.f32 %v277, %v433
        %v498 = vmul.f32 %v278, %v434
        %v499 = vmul.f32 %v277, %v435
        %v500 = vmul.f32 %v278, %v436
        %v501 = vmul.f32 %v277, %v437
        %v502 = vmul.f32 %v278, %v438
        %v503 = vmul.f32 %v277, %v439
        %v504 = vmul.f32 %v278, %v440
        %v505 = vmul.f32 %v277, %v441
        %v506 = vmul.f32 %v278, %v442
        %v507 = vmul.f32 %v277, %v443
        %v508 = vmul.f32 %v278, %v444
        %v509 = vmul.f32 %v277, %v445
        %v510 = vmul.f32 %v278, %v446
        %v511 = vmul.f32 %v277, %v447
        %v512 = vmul.f32 %v278, %v448
        %v513 = vmul.f32 %v277, %v449
        %v514 = vmul.f32 %v278, %v450
        %v515 = vmul.f32 %v277, %v451
        %v516 = vmul.f32 %v278, %v452
        %v517 = vmul.f32 %v277, %v453
        %v518 = vmul.f32 %v278, %v454
        %v519 = vmul.f32 %v277, %v455
        %v520 = vmul.f32 %v278, %v456
        %v521 = vmul.f32 %v277, %v457
        %v522 = vmul.f32 %v278, %v458
        %v523 = vmul.f32 %v277, %v459
        %v524 = vmul.f32 %v278, %v460
        %v525 = vmul.f32 %v277, %v461
        %v526 = vmul.f32 %v278, %v462
        %v527 = vmul.f32 %v277, %v463
        %v528 = vmul.f32 %v278, %v464
        %v529 = vmul.f32 %v277, %v465
        %v530 = vmul.f32 %v278, %v466
        %v531 = vmul.f32 %v277, %v467
        %v532 = vmul.f32 %v278, %v468
        %v533 = vmul.f32 %v277, %v469
        %v534 = vmul.f32 %v278, %v470
        %v535 = vmul.f32 %v277, %v471
        %v536 = vmul.f32 %v278, %v472
        %v537 = vmul.f32 %v277, %v473
        %v538 = vmul.f32 %v278, %v474
        %v539 = vmul.f32 %v196, %v242
        %v540 = vmul.f32 %v197, %v243
        %v541 = vadd.s32 %v279, %v219
        %v542 = vadd.s32 %v280, %v221
        %vm543 = vcmp.eq.s32.totalorder %v245, %v541
        %vm544 = vcmp.eq.s32.totalorder %v245, %v542
        %vm545 = vcmp.eq.s32.totalorder %v246, %v541
        %vm546 = vcmp.eq.s32.totalorder %v246, %v542
        %vm547 = vcmp.eq.s32.totalorder %v247, %v541
        %vm548 = vcmp.eq.s32.totalorder %v247, %v542
        %vm549 = vcmp.eq.s32.totalorder %v248, %v541
        %vm550 = vcmp.eq.s32.totalorder %v248, %v542
        %vm551 = vcmp.eq.s32.totalorder %v249, %v541
        %vm552 = vcmp.eq.s32.totalorder %v249, %v542
        %vm553 = vcmp.eq.s32.totalorder %v250, %v541
        %vm554 = vcmp.eq.s32.totalorder %v250, %v542
        %vm555 = vcmp.eq.s32.totalorder %v251, %v541
        %vm556 = vcmp.eq.s32.totalorder %v251, %v542
        %vm557 = vcmp.eq.s32.totalorder %v252, %v541
        %vm558 = vcmp.eq.s32.totalorder %v252, %v542
        %vm559 = vcmp.eq.s32.totalorder %v253, %v541
        %vm560 = vcmp.eq.s32.totalorder %v253, %v542
        %vm561 = vcmp.eq.s32.totalorder %v254, %v541
        %vm562 = vcmp.eq.s32.totalorder %v254, %v542
        %vm563 = vcmp.eq.s32.totalorder %v255, %v541
        %vm564 = vcmp.eq.s32.totalorder %v255, %v542
        %vm565 = vcmp.eq.s32.totalorder %v256, %v541
        %vm566 = vcmp.eq.s32.totalorder %v256, %v542
        %vm567 = vcmp.eq.s32.totalorder %v257, %v541
        %vm568 = vcmp.eq.s32.totalorder %v257, %v542
        %vm569 = vcmp.eq.s32.totalorder %v258, %v541
        %vm570 = vcmp.eq.s32.totalorder %v258, %v542
        %vm571 = vcmp.eq.s32.totalorder %v259, %v541
        %vm572 = vcmp.eq.s32.totalorder %v259, %v542
        %vm573 = vcmp.eq.s32.totalorder %v260, %v541
        %vm574 = vcmp.eq.s32.totalorder %v260, %v542
        %vm575 = vcmp.eq.s32.totalorder %v261, %v541
        %vm576 = vcmp.eq.s32.totalorder %v261, %v542
        %vm577 = vcmp.eq.s32.totalorder %v262, %v541
        %vm578 = vcmp.eq.s32.totalorder %v262, %v542
        %vm579 = vcmp.eq.s32.totalorder %v263, %v541
        %vm580 = vcmp.eq.s32.totalorder %v263, %v542
        %vm581 = vcmp.eq.s32.totalorder %v264, %v541
        %vm582 = vcmp.eq.s32.totalorder %v264, %v542
        %vm583 = vcmp.eq.s32.totalorder %v265, %v541
        %vm584 = vcmp.eq.s32.totalorder %v265, %v542
        %vm585 = vcmp.eq.s32.totalorder %v266, %v541
        %vm586 = vcmp.eq.s32.totalorder %v266, %v542
        %vm587 = vcmp.eq.s32.totalorder %v267, %v541
        %vm588 = vcmp.eq.s32.totalorder %v267, %v542
        %vm589 = vcmp.eq.s32.totalorder %v268, %v541
        %vm590 = vcmp.eq.s32.totalorder %v268, %v542
        %vm591 = vcmp.eq.s32.totalorder %v269, %v541
        %vm592 = vcmp.eq.s32.totalorder %v269, %v542
        %vm593 = vcmp.eq.s32.totalorder %v270, %v541
        %vm594 = vcmp.eq.s32.totalorder %v270, %v542
        %vm595 = vcmp.eq.s32.totalorder %v271, %v541
        %vm596 = vcmp.eq.s32.totalorder %v271, %v542
        %vm597 = vcmp.eq.s32.totalorder %v272, %v541
        %vm598 = vcmp.eq.s32.totalorder %v272, %v542
        %vm599 = vcmp.eq.s32.totalorder %v273, %v541
        %vm600 = vcmp.eq.s32.totalorder %v273, %v542
        %vm601 = vcmp.eq.s32.totalorder %v274, %v541
        %vm602 = vcmp.eq.s32.totalorder %v274, %v542
        %vm603 = vcmp.eq.s32.totalorder %v275, %v541
        %vm604 = vcmp.eq.s32.totalorder %v275, %v542
        %vm605 = vcmp.eq.s32.totalorder %v276, %v541
        %vm606 = vcmp.eq.s32.totalorder %v276, %v542
        %v607 = vsel %vm543, 1, 0
        %v608 = vsel %vm544, 1, 0
        %v609 = vsel %vm545, 1, 0
        %v610 = vsel %vm546, 1, 0
        %v611 = vsel %vm547, 1, 0
        %v612 = vsel %vm548, 1, 0
        %v613 = vsel %vm549, 1, 0
        %v614 = vsel %vm550, 1, 0
        %v615 = vsel %vm551, 1, 0
        %v616 = vsel %vm552, 1, 0
        %v617 = vsel %vm553, 1, 0
        %v618 = vsel %vm554, 1, 0
        %v619 = vsel %vm555, 1, 0
        %v620 = vsel %vm556, 1, 0
        %v621 = vsel %vm557, 1, 0
        %v622 = vsel %vm558, 1, 0
        %v623 = vsel %vm559, 1, 0
        %v624 = vsel %vm560, 1, 0
        %v625 = vsel %vm561, 1, 0
        %v626 = vsel %vm562, 1, 0
        %v627 = vsel %vm563, 1, 0
        %v628 = vsel %vm564, 1, 0
        %v629 = vsel %vm565, 1, 0
        %v630 = vsel %vm566, 1, 0
        %v631 = vsel %vm567, 1, 0
        %v632 = vsel %vm568, 1, 0
        %v633 = vsel %vm569, 1, 0
        %v634 = vsel %vm570, 1, 0
        %v635 = vsel %vm571, 1, 0
        %v636 = vsel %vm572, 1, 0
        %v637 = vsel %vm573, 1, 0
        %v638 = vsel %vm574, 1, 0
        %v639 = vsel %vm575, 1, 0
        %v640 = vsel %vm576, 1, 0
        %v641 = vsel %vm577, 1, 0
        %v642 = vsel %vm578, 1, 0
        %v643 = vsel %vm579, 1, 0
        %v644 = vsel %vm580, 1, 0
        %v645 = vsel %vm581, 1, 0
        %v646 = vsel %vm582, 1, 0
        %v647 = vsel %vm583, 1, 0
        %v648 = vsel %vm584, 1, 0
        %v649 = vsel %vm585, 1, 0
        %v650 = vsel %vm586, 1, 0
        %v651 = vsel %vm587, 1, 0
        %v652 = vsel %vm588, 1, 0
        %v653 = vsel %vm589, 1, 0
        %v654 = vsel %vm590, 1, 0
        %v655 = vsel %vm591, 1, 0
        %v656 = vsel %vm592, 1, 0
        %v657 = vsel %vm593, 1, 0
        %v658 = vsel %vm594, 1, 0
        %v659 = vsel %vm595, 1, 0
        %v660 = vsel %vm596, 1, 0
        %v661 = vsel %vm597, 1, 0
        %v662 = vsel %vm598, 1, 0
        %v663 = vsel %vm599, 1, 0
        %v664 = vsel %vm600, 1, 0
        %v665 = vsel %vm601, 1, 0
        %v666 = vsel %vm602, 1, 0
        %v667 = vsel %vm603, 1, 0
        %v668 = vsel %vm604, 1, 0
        %v669 = vsel %vm605, 1, 0
        %v670 = vsel %vm606, 1, 0
        %v671 = vcvt.s32.f32 %v607
        %v672 = vcvt.s32.f32 %v608
        %v673 = vcvt.s32.f32 %v609
        %v674 = vcvt.s32.f32 %v610
        %v675 = vcvt.s32.f32 %v611
        %v676 = vcvt.s32.f32 %v612
        %v677 = vcvt.s32.f32 %v613
        %v678 = vcvt.s32.f32 %v614
        %v679 = vcvt.s32.f32 %v615
        %v680 = vcvt.s32.f32 %v616
        %v681 = vcvt.s32.f32 %v617
        %v682 = vcvt.s32.f32 %v618
        %v683 = vcvt.s32.f32 %v619
        %v684 = vcvt.s32.f32 %v620
        %v685 = vcvt.s32.f32 %v621
        %v686 = vcvt.s32.f32 %v622
        %v687 = vcvt.s32.f32 %v623
        %v688 = vcvt.s32.f32 %v624
        %v689 = vcvt.s32.f32 %v625
        %v690 = vcvt.s32.f32 %v626
        %v691 = vcvt.s32.f32 %v627
        %v692 = vcvt.s32.f32 %v628
        %v693 = vcvt.s32.f32 %v629
        %v694 = vcvt.s32.f32 %v630
        %v695 = vcvt.s32.f32 %v631
        %v696 = vcvt.s32.f32 %v632
        %v697 = vcvt.s32.f32 %v633
        %v698 = vcvt.s32.f32 %v634
        %v699 = vcvt.s32.f32 %v635
        %v700 = vcvt.s32.f32 %v636
        %v701 = vcvt.s32.f32 %v637
        %v702 = vcvt.s32.f32 %v638
        %v703 = vcvt.s32.f32 %v639
        %v704 = vcvt.s32.f32 %v640
        %v705 = vcvt.s32.f32 %v641
        %v706 = vcvt.s32.f32 %v642
        %v707 = vcvt.s32.f32 %v643
        %v708 = vcvt.s32.f32 %v644
        %v709 = vcvt.s32.f32 %v645
        %v710 = vcvt.s32.f32 %v646
        %v711 = vcvt.s32.f32 %v647
        %v712 = vcvt.s32.f32 %v648
        %v713 = vcvt.s32.f32 %v649
        %v714 = vcvt.s32.f32 %v650
        %v715 = vcvt.s32.f32 %v651
        %v716 = vcvt.s32.f32 %v652
        %v717 = vcvt.s32.f32 %v653
        %v718 = vcvt.s32.f32 %v654
        %v719 = vcvt.s32.f32 %v655
        %v720 = vcvt.s32.f32 %v656
        %v721 = vcvt.s32.f32 %v657
        %v722 = vcvt.s32.f32 %v658
        %v723 = vcvt.s32.f32 %v659
        %v724 = vcvt.s32.f32 %v660
        %v725 = vcvt.s32.f32 %v661
        %v726 = vcvt.s32.f32 %v662
        %v727 = vcvt.s32.f32 %v663
        %v728 = vcvt.s32.f32 %v664
        %v729 = vcvt.s32.f32 %v665
        %v730 = vcvt.s32.f32 %v666
        %v731 = vcvt.s32.f32 %v667
        %v732 = vcvt.s32.f32 %v668
        %v733 = vcvt.s32.f32 %v669
        %v734 = vcvt.s32.f32 %v670
        %v735 = vmul.f32 %v539, %v671
        %v736 = vmul.f32 %v540, %v672
        %v737 = vmul.f32 %v539, %v673
        %v738 = vmul.f32 %v540, %v674
        %v739 = vmul.f32 %v539, %v675
        %v740 = vmul.f32 %v540, %v676
        %v741 = vmul.f32 %v539, %v677
        %v742 = vmul.f32 %v540, %v678
        %v743 = vmul.f32 %v539, %v679
        %v744 = vmul.f32 %v540, %v680
        %v745 = vmul.f32 %v539, %v681
        %v746 = vmul.f32 %v540, %v682
        %v747 = vmul.f32 %v539, %v683
        %v748 = vmul.f32 %v540, %v684
        %v749 = vmul.f32 %v539, %v685
        %v750 = vmul.f32 %v540, %v686
        %v751 = vmul.f32 %v539, %v687
        %v752 = vmul.f32 %v540, %v688
        %v753 = vmul.f32 %v539, %v689
        %v754 = vmul.f32 %v540, %v690
        %v755 = vmul.f32 %v539, %v691
        %v756 = vmul.f32 %v540, %v692
        %v757 = vmul.f32 %v539, %v693
        %v758 = vmul.f32 %v540, %v694
        %v759 = vmul.f32 %v539, %v695
        %v760 = vmul.f32 %v540, %v696
        %v761 = vmul.f32 %v539, %v697
        %v762 = vmul.f32 %v540, %v698
        %v763 = vmul.f32 %v539, %v699
        %v764 = vmul.f32 %v540, %v700
        %v765 = vmul.f32 %v539, %v701
        %v766 = vmul.f32 %v540, %v702
        %v767 = vmul.f32 %v539, %v703
        %v768 = vmul.f32 %v540, %v704
        %v769 = vmul.f32 %v539, %v705
        %v770 = vmul.f32 %v540, %v706
        %v771 = vmul.f32 %v539, %v707
        %v772 = vmul.f32 %v540, %v708
        %v773 = vmul.f32 %v539, %v709
        %v774 = vmul.f32 %v540, %v710
        %v775 = vmul.f32 %v539, %v711
        %v776 = vmul.f32 %v540, %v712
        %v777 = vmul.f32 %v539, %v713
        %v778 = vmul.f32 %v540, %v714
        %v779 = vmul.f32 %v539, %v715
        %v780 = vmul.f32 %v540, %v716
        %v781 = vmul.f32 %v539, %v717
        %v782 = vmul.f32 %v540, %v718
        %v783 = vmul.f32 %v539, %v719
        %v784 = vmul.f32 %v540, %v720
        %v785 = vmul.f32 %v539, %v721
        %v786 = vmul.f32 %v540, %v722
        %v787 = vmul.f32 %v539, %v723
        %v788 = vmul.f32 %v540, %v724
        %v789 = vmul.f32 %v539, %v725
        %v790 = vmul.f32 %v540, %v726
        %v791 = vmul.f32 %v539, %v727
        %v792 = vmul.f32 %v540, %v728
        %v793 = vmul.f32 %v539, %v729
        %v794 = vmul.f32 %v540, %v730
        %v795 = vmul.f32 %v539, %v731
        %v796 = vmul.f32 %v540, %v732
        %v797 = vmul.f32 %v539, %v733
        %v798 = vmul.f32 %v540, %v734
        %v799 = vadd.f32 %v475, %v735
        %v800 = vadd.f32 %v476, %v736
        %v801 = vadd.f32 %v477, %v737
        %v802 = vadd.f32 %v478, %v738
        %v803 = vadd.f32 %v479, %v739
        %v804 = vadd.f32 %v480, %v740
        %v805 = vadd.f32 %v481, %v741
        %v806 = vadd.f32 %v482, %v742
        %v807 = vadd.f32 %v483, %v743
        %v808 = vadd.f32 %v484, %v744
        %v809 = vadd.f32 %v485, %v745
        %v810 = vadd.f32 %v486, %v746
        %v811 = vadd.f32 %v487, %v747
        %v812 = vadd.f32 %v488, %v748
        %v813 = vadd.f32 %v489, %v749
        %v814 = vadd.f32 %v490, %v750
        %v815 = vadd.f32 %v491, %v751
        %v816 = vadd.f32 %v492, %v752
        %v817 = vadd.f32 %v493, %v753
        %v818 = vadd.f32 %v494, %v754
        %v819 = vadd.f32 %v495, %v755
        %v820 = vadd.f32 %v496, %v756
        %v821 = vadd.f32 %v497, %v757
        %v822 = vadd.f32 %v498, %v758
        %v823 = vadd.f32 %v499, %v759
        %v824 = vadd.f32 %v500, %v760
        %v825 = vadd.f32 %v501, %v761
        %v826 = vadd.f32 %v502, %v762
        %v827 = vadd.f32 %v503, %v763
        %v828 = vadd.f32 %v504, %v764
        %v829 = vadd.f32 %v505, %v765
        %v830 = vadd.f32 %v506, %v766
        %v831 = vadd.f32 %v507, %v767
        %v832 = vadd.f32 %v508, %v768
        %v833 = vadd.f32 %v509, %v769
        %v834 = vadd.f32 %v510, %v770
        %v835 = vadd.f32 %v511, %v771
        %v836 = vadd.f32 %v512, %v772
        %v837 = vadd.f32 %v513, %v773
        %v838 = vadd.f32 %v514, %v774
        %v839 = vadd.f32 %v515, %v775
        %v840 = vadd.f32 %v516, %v776
        %v841 = vadd.f32 %v517, %v777
        %v842 = vadd.f32 %v518, %v778
        %v843 = vadd.f32 %v519, %v779
        %v844 = vadd.f32 %v520, %v780
        %v845 = vadd.f32 %v521, %v781
        %v846 = vadd.f32 %v522, %v782
        %v847 = vadd.f32 %v523, %v783
        %v848 = vadd.f32 %v524, %v784
        %v849 = vadd.f32 %v525, %v785
        %v850 = vadd.f32 %v526, %v786
        %v851 = vadd.f32 %v527, %v787
        %v852 = vadd.f32 %v528, %v788
        %v853 = vadd.f32 %v529, %v789
        %v854 = vadd.f32 %v530, %v790
        %v855 = vadd.f32 %v531, %v791
        %v856 = vadd.f32 %v532, %v792
        %v857 = vadd.f32 %v533, %v793
        %v858 = vadd.f32 %v534, %v794
        %v859 = vadd.f32 %v535, %v795
        %v860 = vadd.f32 %v536, %v796
        %v861 = vadd.f32 %v537, %v797
        %v862 = vadd.f32 %v538, %v798
        %v863 = vmul.f32 %v240, %v198
        %v864 = vmul.f32 %v241, %v199
        %v865 = vmul.u32 %v237, 16
        %v866 = vmul.u32 %v239, 16
        %v867 = vadd.s32 %v865, %v209
        %v868 = vadd.s32 %v866, %v211
        %vm869 = vcmp.eq.s32.totalorder %v245, %v867
        %vm870 = vcmp.eq.s32.totalorder %v245, %v868
        %vm871 = vcmp.eq.s32.totalorder %v246, %v867
        %vm872 = vcmp.eq.s32.totalorder %v246, %v868
        %vm873 = vcmp.eq.s32.totalorder %v247, %v867
        %vm874 = vcmp.eq.s32.totalorder %v247, %v868
        %vm875 = vcmp.eq.s32.totalorder %v248, %v867
        %vm876 = vcmp.eq.s32.totalorder %v248, %v868
        %vm877 = vcmp.eq.s32.totalorder %v249, %v867
        %vm878 = vcmp.eq.s32.totalorder %v249, %v868
        %vm879 = vcmp.eq.s32.totalorder %v250, %v867
        %vm880 = vcmp.eq.s32.totalorder %v250, %v868
        %vm881 = vcmp.eq.s32.totalorder %v251, %v867
        %vm882 = vcmp.eq.s32.totalorder %v251, %v868
        %vm883 = vcmp.eq.s32.totalorder %v252, %v867
        %vm884 = vcmp.eq.s32.totalorder %v252, %v868
        %vm885 = vcmp.eq.s32.totalorder %v253, %v867
        %vm886 = vcmp.eq.s32.totalorder %v253, %v868
        %vm887 = vcmp.eq.s32.totalorder %v254, %v867
        %vm888 = vcmp.eq.s32.totalorder %v254, %v868
        %vm889 = vcmp.eq.s32.totalorder %v255, %v867
        %vm890 = vcmp.eq.s32.totalorder %v255, %v868
        %vm891 = vcmp.eq.s32.totalorder %v256, %v867
        %vm892 = vcmp.eq.s32.totalorder %v256, %v868
        %vm893 = vcmp.eq.s32.totalorder %v257, %v867
        %vm894 = vcmp.eq.s32.totalorder %v257, %v868
        %vm895 = vcmp.eq.s32.totalorder %v258, %v867
        %vm896 = vcmp.eq.s32.totalorder %v258, %v868
        %vm897 = vcmp.eq.s32.totalorder %v259, %v867
        %vm898 = vcmp.eq.s32.totalorder %v259, %v868
        %vm899 = vcmp.eq.s32.totalorder %v260, %v867
        %vm900 = vcmp.eq.s32.totalorder %v260, %v868
        %vm901 = vcmp.eq.s32.totalorder %v261, %v867
        %vm902 = vcmp.eq.s32.totalorder %v261, %v868
        %vm903 = vcmp.eq.s32.totalorder %v262, %v867
        %vm904 = vcmp.eq.s32.totalorder %v262, %v868
        %vm905 = vcmp.eq.s32.totalorder %v263, %v867
        %vm906 = vcmp.eq.s32.totalorder %v263, %v868
        %vm907 = vcmp.eq.s32.totalorder %v264, %v867
        %vm908 = vcmp.eq.s32.totalorder %v264, %v868
        %vm909 = vcmp.eq.s32.totalorder %v265, %v867
        %vm910 = vcmp.eq.s32.totalorder %v265, %v868
        %vm911 = vcmp.eq.s32.totalorder %v266, %v867
        %vm912 = vcmp.eq.s32.totalorder %v266, %v868
        %vm913 = vcmp.eq.s32.totalorder %v267, %v867
        %vm914 = vcmp.eq.s32.totalorder %v267, %v868
        %vm915 = vcmp.eq.s32.totalorder %v268, %v867
        %vm916 = vcmp.eq.s32.totalorder %v268, %v868
        %vm917 = vcmp.eq.s32.totalorder %v269, %v867
        %vm918 = vcmp.eq.s32.totalorder %v269, %v868
        %vm919 = vcmp.eq.s32.totalorder %v270, %v867
        %vm920 = vcmp.eq.s32.totalorder %v270, %v868
        %vm921 = vcmp.eq.s32.totalorder %v271, %v867
        %vm922 = vcmp.eq.s32.totalorder %v271, %v868
        %vm923 = vcmp.eq.s32.totalorder %v272, %v867
        %vm924 = vcmp.eq.s32.totalorder %v272, %v868
        %vm925 = vcmp.eq.s32.totalorder %v273, %v867
        %vm926 = vcmp.eq.s32.totalorder %v273, %v868
        %vm927 = vcmp.eq.s32.totalorder %v274, %v867
        %vm928 = vcmp.eq.s32.totalorder %v274, %v868
        %vm929 = vcmp.eq.s32.totalorder %v275, %v867
        %vm930 = vcmp.eq.s32.totalorder %v275, %v868
        %vm931 = vcmp.eq.s32.totalorder %v276, %v867
        %vm932 = vcmp.eq.s32.totalorder %v276, %v868
        %v933 = vsel %vm869, 1, 0
        %v934 = vsel %vm870, 1, 0
        %v935 = vsel %vm871, 1, 0
        %v936 = vsel %vm872, 1, 0
        %v937 = vsel %vm873, 1, 0
        %v938 = vsel %vm874, 1, 0
        %v939 = vsel %vm875, 1, 0
        %v940 = vsel %vm876, 1, 0
        %v941 = vsel %vm877, 1, 0
        %v942 = vsel %vm878, 1, 0
        %v943 = vsel %vm879, 1, 0
        %v944 = vsel %vm880, 1, 0
        %v945 = vsel %vm881, 1, 0
        %v946 = vsel %vm882, 1, 0
        %v947 = vsel %vm883, 1, 0
        %v948 = vsel %vm884, 1, 0
        %v949 = vsel %vm885, 1, 0
        %v950 = vsel %vm886, 1, 0
        %v951 = vsel %vm887, 1, 0
        %v952 = vsel %vm888, 1, 0
        %v953 = vsel %vm889, 1, 0
        %v954 = vsel %vm890, 1, 0
        %v955 = vsel %vm891, 1, 0
        %v956 = vsel %vm892, 1, 0
        %v957 = vsel %vm893, 1, 0
        %v958 = vsel %vm894, 1, 0
        %v959 = vsel %vm895, 1, 0
        %v960 = vsel %vm896, 1, 0
        %v961 = vsel %vm897, 1, 0
        %v962 = vsel %vm898, 1, 0
        %v963 = vsel %vm899, 1, 0
        %v964 = vsel %vm900, 1, 0
        %v965 = vsel %vm901, 1, 0
        %v966 = vsel %vm902, 1, 0
        %v967 = vsel %vm903, 1, 0
        %v968 = vsel %vm904, 1, 0
        %v969 = vsel %vm905, 1, 0
        %v970 = vsel %vm906, 1, 0
        %v971 = vsel %vm907, 1, 0
        %v972 = vsel %vm908, 1, 0
        %v973 = vsel %vm909, 1, 0
        %v974 = vsel %vm910, 1, 0
        %v975 = vsel %vm911, 1, 0
        %v976 = vsel %vm912, 1, 0
        %v977 = vsel %vm913, 1, 0
        %v978 = vsel %vm914, 1, 0
        %v979 = vsel %vm915, 1, 0
        %v980 = vsel %vm916, 1, 0
        %v981 = vsel %vm917, 1, 0
        %v982 = vsel %vm918, 1, 0
        %v983 = vsel %vm919, 1, 0
        %v984 = vsel %vm920, 1, 0
        %v985 = vsel %vm921, 1, 0
        %v986 = vsel %vm922, 1, 0
        %v987 = vsel %vm923, 1, 0
        %v988 = vsel %vm924, 1, 0
        %v989 = vsel %vm925, 1, 0
        %v990 = vsel %vm926, 1, 0
        %v991 = vsel %vm927, 1, 0
        %v992 = vsel %vm928, 1, 0
        %v993 = vsel %vm929, 1, 0
        %v994 = vsel %vm930, 1, 0
        %v995 = vsel %vm931, 1, 0
        %v996 = vsel %vm932, 1, 0
        %v997 = vcvt.s32.f32 %v933
        %v998 = vcvt.s32.f32 %v934
        %v999 = vcvt.s32.f32 %v935
        %v1000 = vcvt.s32.f32 %v936
        %v1001 = vcvt.s32.f32 %v937
        %v1002 = vcvt.s32.f32 %v938
        %v1003 = vcvt.s32.f32 %v939
        %v1004 = vcvt.s32.f32 %v940
        %v1005 = vcvt.s32.f32 %v941
        %v1006 = vcvt.s32.f32 %v942
        %v1007 = vcvt.s32.f32 %v943
        %v1008 = vcvt.s32.f32 %v944
        %v1009 = vcvt.s32.f32 %v945
        %v1010 = vcvt.s32.f32 %v946
        %v1011 = vcvt.s32.f32 %v947
        %v1012 = vcvt.s32.f32 %v948
        %v1013 = vcvt.s32.f32 %v949
        %v1014 = vcvt.s32.f32 %v950
        %v1015 = vcvt.s32.f32 %v951
        %v1016 = vcvt.s32.f32 %v952
        %v1017 = vcvt.s32.f32 %v953
        %v1018 = vcvt.s32.f32 %v954
        %v1019 = vcvt.s32.f32 %v955
        %v1020 = vcvt.s32.f32 %v956
        %v1021 = vcvt.s32.f32 %v957
        %v1022 = vcvt.s32.f32 %v958
        %v1023 = vcvt.s32.f32 %v959
        %v1024 = vcvt.s32.f32 %v960
        %v1025 = vcvt.s32.f32 %v961
        %v1026 = vcvt.s32.f32 %v962
        %v1027 = vcvt.s32.f32 %v963
        %v1028 = vcvt.s32.f32 %v964
        %v1029 = vcvt.s32.f32 %v965
        %v1030 = vcvt.s32.f32 %v966
        %v1031 = vcvt.s32.f32 %v967
        %v1032 = vcvt.s32.f32 %v968
        %v1033 = vcvt.s32.f32 %v969
        %v1034 = vcvt.s32.f32 %v970
        %v1035 = vcvt.s32.f32 %v971
        %v1036 = vcvt.s32.f32 %v972
        %v1037 = vcvt.s32.f32 %v973
        %v1038 = vcvt.s32.f32 %v974
        %v1039 = vcvt.s32.f32 %v975
        %v1040 = vcvt.s32.f32 %v976
        %v1041 = vcvt.s32.f32 %v977
        %v1042 = vcvt.s32.f32 %v978
        %v1043 = vcvt.s32.f32 %v979
        %v1044 = vcvt.s32.f32 %v980
        %v1045 = vcvt.s32.f32 %v981
        %v1046 = vcvt.s32.f32 %v982
        %v1047 = vcvt.s32.f32 %v983
        %v1048 = vcvt.s32.f32 %v984
        %v1049 = vcvt.s32.f32 %v985
        %v1050 = vcvt.s32.f32 %v986
        %v1051 = vcvt.s32.f32 %v987
        %v1052 = vcvt.s32.f32 %v988
        %v1053 = vcvt.s32.f32 %v989
        %v1054 = vcvt.s32.f32 %v990
        %v1055 = vcvt.s32.f32 %v991
        %v1056 = vcvt.s32.f32 %v992
        %v1057 = vcvt.s32.f32 %v993
        %v1058 = vcvt.s32.f32 %v994
        %v1059 = vcvt.s32.f32 %v995
        %v1060 = vcvt.s32.f32 %v996
        %v1061 = vmul.f32 %v863, %v997
        %v1062 = vmul.f32 %v864, %v998
        %v1063 = vmul.f32 %v863, %v999
        %v1064 = vmul.f32 %v864, %v1000
        %v1065 = vmul.f32 %v863, %v1001
        %v1066 = vmul.f32 %v864, %v1002
        %v1067 = vmul.f32 %v863, %v1003
        %v1068 = vmul.f32 %v864, %v1004
        %v1069 = vmul.f32 %v863, %v1005
        %v1070 = vmul.f32 %v864, %v1006
        %v1071 = vmul.f32 %v863, %v1007
        %v1072 = vmul.f32 %v864, %v1008
        %v1073 = vmul.f32 %v863, %v1009
        %v1074 = vmul.f32 %v864, %v1010
        %v1075 = vmul.f32 %v863, %v1011
        %v1076 = vmul.f32 %v864, %v1012
        %v1077 = vmul.f32 %v863, %v1013
        %v1078 = vmul.f32 %v864, %v1014
        %v1079 = vmul.f32 %v863, %v1015
        %v1080 = vmul.f32 %v864, %v1016
        %v1081 = vmul.f32 %v863, %v1017
        %v1082 = vmul.f32 %v864, %v1018
        %v1083 = vmul.f32 %v863, %v1019
        %v1084 = vmul.f32 %v864, %v1020
        %v1085 = vmul.f32 %v863, %v1021
        %v1086 = vmul.f32 %v864, %v1022
        %v1087 = vmul.f32 %v863, %v1023
        %v1088 = vmul.f32 %v864, %v1024
        %v1089 = vmul.f32 %v863, %v1025
        %v1090 = vmul.f32 %v864, %v1026
        %v1091 = vmul.f32 %v863, %v1027
        %v1092 = vmul.f32 %v864, %v1028
        %v1093 = vmul.f32 %v863, %v1029
        %v1094 = vmul.f32 %v864, %v1030
        %v1095 = vmul.f32 %v863, %v1031
        %v1096 = vmul.f32 %v864, %v1032
        %v1097 = vmul.f32 %v863, %v1033
        %v1098 = vmul.f32 %v864, %v1034
        %v1099 = vmul.f32 %v863, %v1035
        %v1100 = vmul.f32 %v864, %v1036
        %v1101 = vmul.f32 %v863, %v1037
        %v1102 = vmul.f32 %v864, %v1038
        %v1103 = vmul.f32 %v863, %v1039
        %v1104 = vmul.f32 %v864, %v1040
        %v1105 = vmul.f32 %v863, %v1041
        %v1106 = vmul.f32 %v864, %v1042
        %v1107 = vmul.f32 %v863, %v1043
        %v1108 = vmul.f32 %v864, %v1044
        %v1109 = vmul.f32 %v863, %v1045
        %v1110 = vmul.f32 %v864, %v1046
        %v1111 = vmul.f32 %v863, %v1047
        %v1112 = vmul.f32 %v864, %v1048
        %v1113 = vmul.f32 %v863, %v1049
        %v1114 = vmul.f32 %v864, %v1050
        %v1115 = vmul.f32 %v863, %v1051
        %v1116 = vmul.f32 %v864, %v1052
        %v1117 = vmul.f32 %v863, %v1053
        %v1118 = vmul.f32 %v864, %v1054
        %v1119 = vmul.f32 %v863, %v1055
        %v1120 = vmul.f32 %v864, %v1056
        %v1121 = vmul.f32 %v863, %v1057
        %v1122 = vmul.f32 %v864, %v1058
        %v1123 = vmul.f32 %v863, %v1059
        %v1124 = vmul.f32 %v864, %v1060
        %v1125 = vadd.f32 %v799, %v1061
        %v1126 = vadd.f32 %v800, %v1062
        %v1127 = vadd.f32 %v801, %v1063
        %v1128 = vadd.f32 %v802, %v1064
        %v1129 = vadd.f32 %v803, %v1065
        %v1130 = vadd.f32 %v804, %v1066
        %v1131 = vadd.f32 %v805, %v1067
        %v1132 = vadd.f32 %v806, %v1068
        %v1133 = vadd.f32 %v807, %v1069
        %v1134 = vadd.f32 %v808, %v1070
        %v1135 = vadd.f32 %v809, %v1071
        %v1136 = vadd.f32 %v810, %v1072
        %v1137 = vadd.f32 %v811, %v1073
        %v1138 = vadd.f32 %v812, %v1074
        %v1139 = vadd.f32 %v813, %v1075
        %v1140 = vadd.f32 %v814, %v1076
        %v1141 = vadd.f32 %v815, %v1077
        %v1142 = vadd.f32 %v816, %v1078
        %v1143 = vadd.f32 %v817, %v1079
        %v1144 = vadd.f32 %v818, %v1080
        %v1145 = vadd.f32 %v819, %v1081
        %v1146 = vadd.f32 %v820, %v1082
        %v1147 = vadd.f32 %v821, %v1083
        %v1148 = vadd.f32 %v822, %v1084
        %v1149 = vadd.f32 %v823, %v1085
        %v1150 = vadd.f32 %v824, %v1086
        %v1151 = vadd.f32 %v825, %v1087
        %v1152 = vadd.f32 %v826, %v1088
        %v1153 = vadd.f32 %v827, %v1089
        %v1154 = vadd.f32 %v828, %v1090
        %v1155 = vadd.f32 %v829, %v1091
        %v1156 = vadd.f32 %v830, %v1092
        %v1157 = vadd.f32 %v831, %v1093
        %v1158 = vadd.f32 %v832, %v1094
        %v1159 = vadd.f32 %v833, %v1095
        %v1160 = vadd.f32 %v834, %v1096
        %v1161 = vadd.f32 %v835, %v1097
        %v1162 = vadd.f32 %v836, %v1098
        %v1163 = vadd.f32 %v837, %v1099
        %v1164 = vadd.f32 %v838, %v1100
        %v1165 = vadd.f32 %v839, %v1101
        %v1166 = vadd.f32 %v840, %v1102
        %v1167 = vadd.f32 %v841, %v1103
        %v1168 = vadd.f32 %v842, %v1104
        %v1169 = vadd.f32 %v843, %v1105
        %v1170 = vadd.f32 %v844, %v1106
        %v1171 = vadd.f32 %v845, %v1107
        %v1172 = vadd.f32 %v846, %v1108
        %v1173 = vadd.f32 %v847, %v1109
        %v1174 = vadd.f32 %v848, %v1110
        %v1175 = vadd.f32 %v849, %v1111
        %v1176 = vadd.f32 %v850, %v1112
        %v1177 = vadd.f32 %v851, %v1113
        %v1178 = vadd.f32 %v852, %v1114
        %v1179 = vadd.f32 %v853, %v1115
        %v1180 = vadd.f32 %v854, %v1116
        %v1181 = vadd.f32 %v855, %v1117
        %v1182 = vadd.f32 %v856, %v1118
        %v1183 = vadd.f32 %v857, %v1119
        %v1184 = vadd.f32 %v858, %v1120
        %v1185 = vadd.f32 %v859, %v1121
        %v1186 = vadd.f32 %v860, %v1122
        %v1187 = vadd.f32 %v861, %v1123
        %v1188 = vadd.f32 %v862, %v1124
        %v1189 = vmul.f32 %v196, %v198
        %v1190 = vmul.f32 %v197, %v199
        %v1191 = vadd.s32 %v865, %v219
        %v1192 = vadd.s32 %v866, %v221
        %vm1193 = vcmp.eq.s32.totalorder %v245, %v1191
        %vm1194 = vcmp.eq.s32.totalorder %v245, %v1192
        %vm1195 = vcmp.eq.s32.totalorder %v246, %v1191
        %vm1196 = vcmp.eq.s32.totalorder %v246, %v1192
        %vm1197 = vcmp.eq.s32.totalorder %v247, %v1191
        %vm1198 = vcmp.eq.s32.totalorder %v247, %v1192
        %vm1199 = vcmp.eq.s32.totalorder %v248, %v1191
        %vm1200 = vcmp.eq.s32.totalorder %v248, %v1192
        %vm1201 = vcmp.eq.s32.totalorder %v249, %v1191
        %vm1202 = vcmp.eq.s32.totalorder %v249, %v1192
        %vm1203 = vcmp.eq.s32.totalorder %v250, %v1191
        %vm1204 = vcmp.eq.s32.totalorder %v250, %v1192
        %vm1205 = vcmp.eq.s32.totalorder %v251, %v1191
        %vm1206 = vcmp.eq.s32.totalorder %v251, %v1192
        %vm1207 = vcmp.eq.s32.totalorder %v252, %v1191
        %vm1208 = vcmp.eq.s32.totalorder %v252, %v1192
        %vm1209 = vcmp.eq.s32.totalorder %v253, %v1191
        %vm1210 = vcmp.eq.s32.totalorder %v253, %v1192
        %vm1211 = vcmp.eq.s32.totalorder %v254, %v1191
        %vm1212 = vcmp.eq.s32.totalorder %v254, %v1192
        %vm1213 = vcmp.eq.s32.totalorder %v255, %v1191
        %vm1214 = vcmp.eq.s32.totalorder %v255, %v1192
        %vm1215 = vcmp.eq.s32.totalorder %v256, %v1191
        %vm1216 = vcmp.eq.s32.totalorder %v256, %v1192
        %vm1217 = vcmp.eq.s32.totalorder %v257, %v1191
        %vm1218 = vcmp.eq.s32.totalorder %v257, %v1192
        %vm1219 = vcmp.eq.s32.totalorder %v258, %v1191
        %vm1220 = vcmp.eq.s32.totalorder %v258, %v1192
        %vm1221 = vcmp.eq.s32.totalorder %v259, %v1191
        %vm1222 = vcmp.eq.s32.totalorder %v259, %v1192
        %vm1223 = vcmp.eq.s32.totalorder %v260, %v1191
        %vm1224 = vcmp.eq.s32.totalorder %v260, %v1192
        %vm1225 = vcmp.eq.s32.totalorder %v261, %v1191
        %vm1226 = vcmp.eq.s32.totalorder %v261, %v1192
        %vm1227 = vcmp.eq.s32.totalorder %v262, %v1191
        %vm1228 = vcmp.eq.s32.totalorder %v262, %v1192
        %vm1229 = vcmp.eq.s32.totalorder %v263, %v1191
        %vm1230 = vcmp.eq.s32.totalorder %v263, %v1192
        %vm1231 = vcmp.eq.s32.totalorder %v264, %v1191
        %vm1232 = vcmp.eq.s32.totalorder %v264, %v1192
        %vm1233 = vcmp.eq.s32.totalorder %v265, %v1191
        %vm1234 = vcmp.eq.s32.totalorder %v265, %v1192
        %vm1235 = vcmp.eq.s32.totalorder %v266, %v1191
        %vm1236 = vcmp.eq.s32.totalorder %v266, %v1192
        %vm1237 = vcmp.eq.s32.totalorder %v267, %v1191
        %vm1238 = vcmp.eq.s32.totalorder %v267, %v1192
        %vm1239 = vcmp.eq.s32.totalorder %v268, %v1191
        %vm1240 = vcmp.eq.s32.totalorder %v268, %v1192
        %vm1241 = vcmp.eq.s32.totalorder %v269, %v1191
        %vm1242 = vcmp.eq.s32.totalorder %v269, %v1192
        %vm1243 = vcmp.eq.s32.totalorder %v270, %v1191
        %vm1244 = vcmp.eq.s32.totalorder %v270, %v1192
        %vm1245 = vcmp.eq.s32.totalorder %v271, %v1191
        %vm1246 = vcmp.eq.s32.totalorder %v271, %v1192
        %vm1247 = vcmp.eq.s32.totalorder %v272, %v1191
        %vm1248 = vcmp.eq.s32.totalorder %v272, %v1192
        %vm1249 = vcmp.eq.s32.totalorder %v273, %v1191
        %vm1250 = vcmp.eq.s32.totalorder %v273, %v1192
        %vm1251 = vcmp.eq.s32.totalorder %v274, %v1191
        %vm1252 = vcmp.eq.s32.totalorder %v274, %v1192
        %vm1253 = vcmp.eq.s32.totalorder %v275, %v1191
        %vm1254 = vcmp.eq.s32.totalorder %v275, %v1192
        %vm1255 = vcmp.eq.s32.totalorder %v276, %v1191
        %vm1256 = vcmp.eq.s32.totalorder %v276, %v1192
        %v1257 = vsel %vm1193, 1, 0
        %v1258 = vsel %vm1194, 1, 0
        %v1259 = vsel %vm1195, 1, 0
        %v1260 = vsel %vm1196, 1, 0
        %v1261 = vsel %vm1197, 1, 0
        %v1262 = vsel %vm1198, 1, 0
        %v1263 = vsel %vm1199, 1, 0
        %v1264 = vsel %vm1200, 1, 0
        %v1265 = vsel %vm1201, 1, 0
        %v1266 = vsel %vm1202, 1, 0
        %v1267 = vsel %vm1203, 1, 0
        %v1268 = vsel %vm1204, 1, 0
        %v1269 = vsel %vm1205, 1, 0
        %v1270 = vsel %vm1206, 1, 0
        %v1271 = vsel %vm1207, 1, 0
        %v1272 = vsel %vm1208, 1, 0
        %v1273 = vsel %vm1209, 1, 0
        %v1274 = vsel %vm1210, 1, 0
        %v1275 = vsel %vm1211, 1, 0
        %v1276 = vsel %vm1212, 1, 0
        %v1277 = vsel %vm1213, 1, 0
        %v1278 = vsel %vm1214, 1, 0
        %v1279 = vsel %vm1215, 1, 0
        %v1280 = vsel %vm1216, 1, 0
        %v1281 = vsel %vm1217, 1, 0
        %v1282 = vsel %vm1218, 1, 0
        %v1283 = vsel %vm1219, 1, 0
        %v1284 = vsel %vm1220, 1, 0
        %v1285 = vsel %vm1221, 1, 0
        %v1286 = vsel %vm1222, 1, 0
        %v1287 = vsel %vm1223, 1, 0
        %v1288 = vsel %vm1224, 1, 0
        %v1289 = vsel %vm1225, 1, 0
        %v1290 = vsel %vm1226, 1, 0
        %v1291 = vsel %vm1227, 1, 0
        %v1292 = vsel %vm1228, 1, 0
        %v1293 = vsel %vm1229, 1, 0
        %v1294 = vsel %vm1230, 1, 0
        %v1295 = vsel %vm1231, 1, 0
        %v1296 = vsel %vm1232, 1, 0
        %v1297 = vsel %vm1233, 1, 0
        %v1298 = vsel %vm1234, 1, 0
        %v1299 = vsel %vm1235, 1, 0
        %v1300 = vsel %vm1236, 1, 0
        %v1301 = vsel %vm1237, 1, 0
        %v1302 = vsel %vm1238, 1, 0
        %v1303 = vsel %vm1239, 1, 0
        %v1304 = vsel %vm1240, 1, 0
        %v1305 = vsel %vm1241, 1, 0
        %v1306 = vsel %vm1242, 1, 0
        %v1307 = vsel %vm1243, 1, 0
        %v1308 = vsel %vm1244, 1, 0
        %v1309 = vsel %vm1245, 1, 0
        %v1310 = vsel %vm1246, 1, 0
        %v1311 = vsel %vm1247, 1, 0
        %v1312 = vsel %vm1248, 1, 0
        %v1313 = vsel %vm1249, 1, 0
        %v1314 = vsel %vm1250, 1, 0
        %v1315 = vsel %vm1251, 1, 0
        %v1316 = vsel %vm1252, 1, 0
        %v1317 = vsel %vm1253, 1, 0
        %v1318 = vsel %vm1254, 1, 0
        %v1319 = vsel %vm1255, 1, 0
        %v1320 = vsel %vm1256, 1, 0
        %v1321 = vcvt.s32.f32 %v1257
        %v1322 = vcvt.s32.f32 %v1258
        %v1323 = vcvt.s32.f32 %v1259
        %v1324 = vcvt.s32.f32 %v1260
        %v1325 = vcvt.s32.f32 %v1261
        %v1326 = vcvt.s32.f32 %v1262
        %v1327 = vcvt.s32.f32 %v1263
        %v1328 = vcvt.s32.f32 %v1264
        %v1329 = vcvt.s32.f32 %v1265
        %v1330 = vcvt.s32.f32 %v1266
        %v1331 = vcvt.s32.f32 %v1267
        %v1332 = vcvt.s32.f32 %v1268
        %v1333 = vcvt.s32.f32 %v1269
        %v1334 = vcvt.s32.f32 %v1270
        %v1335 = vcvt.s32.f32 %v1271
        %v1336 = vcvt.s32.f32 %v1272
        %v1337 = vcvt.s32.f32 %v1273
        %v1338 = vcvt.s32.f32 %v1274
        %v1339 = vcvt.s32.f32 %v1275
        %v1340 = vcvt.s32.f32 %v1276
        %v1341 = vcvt.s32.f32 %v1277
        %v1342 = vcvt.s32.f32 %v1278
        %v1343 = vcvt.s32.f32 %v1279
        %v1344 = vcvt.s32.f32 %v1280
        %v1345 = vcvt.s32.f32 %v1281
        %v1346 = vcvt.s32.f32 %v1282
        %v1347 = vcvt.s32.f32 %v1283
        %v1348 = vcvt.s32.f32 %v1284
        %v1349 = vcvt.s32.f32 %v1285
        %v1350 = vcvt.s32.f32 %v1286
        %v1351 = vcvt.s32.f32 %v1287
        %v1352 = vcvt.s32.f32 %v1288
        %v1353 = vcvt.s32.f32 %v1289
        %v1354 = vcvt.s32.f32 %v1290
        %v1355 = vcvt.s32.f32 %v1291
        %v1356 = vcvt.s32.f32 %v1292
        %v1357 = vcvt.s32.f32 %v1293
        %v1358 = vcvt.s32.f32 %v1294
        %v1359 = vcvt.s32.f32 %v1295
        %v1360 = vcvt.s32.f32 %v1296
        %v1361 = vcvt.s32.f32 %v1297
        %v1362 = vcvt.s32.f32 %v1298
        %v1363 = vcvt.s32.f32 %v1299
        %v1364 = vcvt.s32.f32 %v1300
        %v1365 = vcvt.s32.f32 %v1301
        %v1366 = vcvt.s32.f32 %v1302
        %v1367 = vcvt.s32.f32 %v1303
        %v1368 = vcvt.s32.f32 %v1304
        %v1369 = vcvt.s32.f32 %v1305
        %v1370 = vcvt.s32.f32 %v1306
        %v1371 = vcvt.s32.f32 %v1307
        %v1372 = vcvt.s32.f32 %v1308
        %v1373 = vcvt.s32.f32 %v1309
        %v1374 = vcvt.s32.f32 %v1310
        %v1375 = vcvt.s32.f32 %v1311
        %v1376 = vcvt.s32.f32 %v1312
        %v1377 = vcvt.s32.f32 %v1313
        %v1378 = vcvt.s32.f32 %v1314
        %v1379 = vcvt.s32.f32 %v1315
        %v1380 = vcvt.s32.f32 %v1316
        %v1381 = vcvt.s32.f32 %v1317
        %v1382 = vcvt.s32.f32 %v1318
        %v1383 = vcvt.s32.f32 %v1319
        %v1384 = vcvt.s32.f32 %v1320
        %v1385 = vmul.f32 %v1189, %v1321
        %v1386 = vmul.f32 %v1190, %v1322
        %v1387 = vmul.f32 %v1189, %v1323
        %v1388 = vmul.f32 %v1190, %v1324
        %v1389 = vmul.f32 %v1189, %v1325
        %v1390 = vmul.f32 %v1190, %v1326
        %v1391 = vmul.f32 %v1189, %v1327
        %v1392 = vmul.f32 %v1190, %v1328
        %v1393 = vmul.f32 %v1189, %v1329
        %v1394 = vmul.f32 %v1190, %v1330
        %v1395 = vmul.f32 %v1189, %v1331
        %v1396 = vmul.f32 %v1190, %v1332
        %v1397 = vmul.f32 %v1189, %v1333
        %v1398 = vmul.f32 %v1190, %v1334
        %v1399 = vmul.f32 %v1189, %v1335
        %v1400 = vmul.f32 %v1190, %v1336
        %v1401 = vmul.f32 %v1189, %v1337
        %v1402 = vmul.f32 %v1190, %v1338
        %v1403 = vmul.f32 %v1189, %v1339
        %v1404 = vmul.f32 %v1190, %v1340
        %v1405 = vmul.f32 %v1189, %v1341
        %v1406 = vmul.f32 %v1190, %v1342
        %v1407 = vmul.f32 %v1189, %v1343
        %v1408 = vmul.f32 %v1190, %v1344
        %v1409 = vmul.f32 %v1189, %v1345
        %v1410 = vmul.f32 %v1190, %v1346
        %v1411 = vmul.f32 %v1189, %v1347
        %v1412 = vmul.f32 %v1190, %v1348
        %v1413 = vmul.f32 %v1189, %v1349
        %v1414 = vmul.f32 %v1190, %v1350
        %v1415 = vmul.f32 %v1189, %v1351
        %v1416 = vmul.f32 %v1190, %v1352
        %v1417 = vmul.f32 %v1189, %v1353
        %v1418 = vmul.f32 %v1190, %v1354
        %v1419 = vmul.f32 %v1189, %v1355
        %v1420 = vmul.f32 %v1190, %v1356
        %v1421 = vmul.f32 %v1189, %v1357
        %v1422 = vmul.f32 %v1190, %v1358
        %v1423 = vmul.f32 %v1189, %v1359
        %v1424 = vmul.f32 %v1190, %v1360
        %v1425 = vmul.f32 %v1189, %v1361
        %v1426 = vmul.f32 %v1190, %v1362
        %v1427 = vmul.f32 %v1189, %v1363
        %v1428 = vmul.f32 %v1190, %v1364
        %v1429 = vmul.f32 %v1189, %v1365
        %v1430 = vmul.f32 %v1190, %v1366
        %v1431 = vmul.f32 %v1189, %v1367
        %v1432 = vmul.f32 %v1190, %v1368
        %v1433 = vmul.f32 %v1189, %v1369
        %v1434 = vmul.f32 %v1190, %v1370
        %v1435 = vmul.f32 %v1189, %v1371
        %v1436 = vmul.f32 %v1190, %v1372
        %v1437 = vmul.f32 %v1189, %v1373
        %v1438 = vmul.f32 %v1190, %v1374
        %v1439 = vmul.f32 %v1189, %v1375
        %v1440 = vmul.f32 %v1190, %v1376
        %v1441 = vmul.f32 %v1189, %v1377
        %v1442 = vmul.f32 %v1190, %v1378
        %v1443 = vmul.f32 %v1189, %v1379
        %v1444 = vmul.f32 %v1190, %v1380
        %v1445 = vmul.f32 %v1189, %v1381
        %v1446 = vmul.f32 %v1190, %v1382
        %v1447 = vmul.f32 %v1189, %v1383
        %v1448 = vmul.f32 %v1190, %v1384
        %v1449 = vadd.f32 %v1125, %v1385
        %v1450 = vadd.f32 %v1126, %v1386
        %v1451 = vadd.f32 %v1127, %v1387
        %v1452 = vadd.f32 %v1128, %v1388
        %v1453 = vadd.f32 %v1129, %v1389
        %v1454 = vadd.f32 %v1130, %v1390
        %v1455 = vadd.f32 %v1131, %v1391
        %v1456 = vadd.f32 %v1132, %v1392
        %v1457 = vadd.f32 %v1133, %v1393
        %v1458 = vadd.f32 %v1134, %v1394
        %v1459 = vadd.f32 %v1135, %v1395
        %v1460 = vadd.f32 %v1136, %v1396
        %v1461 = vadd.f32 %v1137, %v1397
        %v1462 = vadd.f32 %v1138, %v1398
        %v1463 = vadd.f32 %v1139, %v1399
        %v1464 = vadd.f32 %v1140, %v1400
        %v1465 = vadd.f32 %v1141, %v1401
        %v1466 = vadd.f32 %v1142, %v1402
        %v1467 = vadd.f32 %v1143, %v1403
        %v1468 = vadd.f32 %v1144, %v1404
        %v1469 = vadd.f32 %v1145, %v1405
        %v1470 = vadd.f32 %v1146, %v1406
        %v1471 = vadd.f32 %v1147, %v1407
        %v1472 = vadd.f32 %v1148, %v1408
        %v1473 = vadd.f32 %v1149, %v1409
        %v1474 = vadd.f32 %v1150, %v1410
        %v1475 = vadd.f32 %v1151, %v1411
        %v1476 = vadd.f32 %v1152, %v1412
        %v1477 = vadd.f32 %v1153, %v1413
        %v1478 = vadd.f32 %v1154, %v1414
        %v1479 = vadd.f32 %v1155, %v1415
        %v1480 = vadd.f32 %v1156, %v1416
        %v1481 = vadd.f32 %v1157, %v1417
        %v1482 = vadd.f32 %v1158, %v1418
        %v1483 = vadd.f32 %v1159, %v1419
        %v1484 = vadd.f32 %v1160, %v1420
        %v1485 = vadd.f32 %v1161, %v1421
        %v1486 = vadd.f32 %v1162, %v1422
        %v1487 = vadd.f32 %v1163, %v1423
        %v1488 = vadd.f32 %v1164, %v1424
        %v1489 = vadd.f32 %v1165, %v1425
        %v1490 = vadd.f32 %v1166, %v1426
        %v1491 = vadd.f32 %v1167, %v1427
        %v1492 = vadd.f32 %v1168, %v1428
        %v1493 = vadd.f32 %v1169, %v1429
        %v1494 = vadd.f32 %v1170, %v1430
        %v1495 = vadd.f32 %v1171, %v1431
        %v1496 = vadd.f32 %v1172, %v1432
        %v1497 = vadd.f32 %v1173, %v1433
        %v1498 = vadd.f32 %v1174, %v1434
        %v1499 = vadd.f32 %v1175, %v1435
        %v1500 = vadd.f32 %v1176, %v1436
        %v1501 = vadd.f32 %v1177, %v1437
        %v1502 = vadd.f32 %v1178, %v1438
        %v1503 = vadd.f32 %v1179, %v1439
        %v1504 = vadd.f32 %v1180, %v1440
        %v1505 = vadd.f32 %v1181, %v1441
        %v1506 = vadd.f32 %v1182, %v1442
        %v1507 = vadd.f32 %v1183, %v1443
        %v1508 = vadd.f32 %v1184, %v1444
        %v1509 = vadd.f32 %v1185, %v1445
        %v1510 = vadd.f32 %v1186, %v1446
        %v1511 = vadd.f32 %v1187, %v1447
        %v1512 = vadd.f32 %v1188, %v1448
        %v1513 = vld [vmem:[%s131] sm:$0xf]
        %v1514 = vunpack.c.l.bf16 %v1513
        %v1516 = vcombine.high %v1514, %v1514
        %1518 = vmatprep.subr.mxu0 %v1450
        %1519 = vmatpush1.msra.mxu0 %v1449
        %1520 = vmatprep.subr.mxu0 %v1452
        %1521 = vmatpush1.msra.mxu0 %v1451
        %1522 = vmatprep.subr.mxu0 %v1454
        %1523 = vmatpush1.msra.mxu0 %v1453
        %1524 = vmatprep.subr.mxu0 %v1456
        %1525 = vmatpush1.msra.mxu0 %v1455
        %1526 = vmatprep.subr.mxu0 %v1458
        %1527 = vmatpush1.msra.mxu0 %v1457
        %1528 = vmatprep.subr.mxu0 %v1460
        %1529 = vmatpush1.msra.mxu0 %v1459
        %1530 = vmatprep.subr.mxu0 %v1462
        %1531 = vmatpush1.msra.mxu0 %v1461
        %1532 = vmatprep.subr.mxu0 %v1464
        %1533 = vmatpush1.msra.mxu0 %v1463
        %1534 = vmatprep.subr.mxu0 %v1466
        %1535 = vmatpush1.msra.mxu0 %v1465
        %1536 = vmatprep.subr.mxu0 %v1468
        %1537 = vmatpush1.msra.mxu0 %v1467
        %1538 = vmatprep.subr.mxu0 %v1470
        %1539 = vmatpush1.msra.mxu0 %v1469
        %1540 = vmatprep.subr.mxu0 %v1472
        %1541 = vmatpush1.msra.mxu0 %v1471
        %1542 = vmatprep.subr.mxu0 %v1474
        %1543 = vmatpush1.msra.mxu0 %v1473
        %1544 = vmatprep.subr.mxu0 %v1476
        %1545 = vmatpush1.msra.mxu0 %v1475
        %1546 = vmatprep.subr.mxu0 %v1478
        %1547 = vmatpush1.msra.mxu0 %v1477
        %1548 = vmatprep.subr.mxu0 %v1480
        %1549 = vmatpush1.msra.mxu0 %v1479
        %1550 = vmatprep.subr.mxu0 %v1482
        %1551 = vmatpush1.msra.mxu0 %v1481
        %1552 = vmatprep.subr.mxu0 %v1484
        %1553 = vmatpush1.msra.mxu0 %v1483
        %1554 = vmatprep.subr.mxu0 %v1486
        %1555 = vmatpush1.msra.mxu0 %v1485
        %1556 = vmatprep.subr.mxu0 %v1488
        %1557 = vmatpush1.msra.mxu0 %v1487
        %1558 = vmatprep.subr.mxu0 %v1490
        %1559 = vmatpush1.msra.mxu0 %v1489
        %1560 = vmatprep.subr.mxu0 %v1492
        %1561 = vmatpush1.msra.mxu0 %v1491
        %1562 = vmatprep.subr.mxu0 %v1494
        %1563 = vmatpush1.msra.mxu0 %v1493
        %1564 = vmatprep.subr.mxu0 %v1496
        %1565 = vmatpush1.msra.mxu0 %v1495
        %1566 = vmatprep.subr.mxu0 %v1498
        %1567 = vmatpush1.msra.mxu0 %v1497
        %1568 = vmatprep.subr.mxu0 %v1500
        %1569 = vmatpush1.msra.mxu0 %v1499
        %1570 = vmatprep.subr.mxu0 %v1502
        %1571 = vmatpush1.msra.mxu0 %v1501
        %1572 = vmatprep.subr.mxu0 %v1504
        %1573 = vmatpush1.msra.mxu0 %v1503
        %1574 = vmatprep.subr.mxu0 %v1506
        %1575 = vmatpush1.msra.mxu0 %v1505
        %1576 = vmatprep.subr.mxu0 %v1508
        %1577 = vmatpush1.msra.mxu0 %v1507
        %1578 = vmatprep.subr.mxu0 %v1510
        %1579 = vmatpush1.msra.mxu0 %v1509
        %1580 = vmatprep.subr.mxu0 %v1512
        %1581 = vmatpush1.msra.mxu0 %v1511
        %1582 = vmatprep.mubr.f32.mxu0 %v1516
        %1583 = vmatmul.mubr.f32.gmra.mrb[0].mxu0 %v1514
        %v1584 = vpop.f32.mrb[0].mxu0
        %v1585 = vadd.f32 0.0, %v1584
        %v1586 = vpop.f32.mrb[0].mxu0
        %v1587 = vadd.f32 0.0, %v1586
        %1588 = vdwg.mxu0
        %v1589 = vpack.c.bf16 %v1585, %v1585
        %v1590 = vpack.c.bf16 %v1587, %v1587
        %v1593 = vcombine.low %v1589, %v1590
        %v1595 = vunpack.c.l.s4 1983009808
        %v1596 = vunpack.c.0.s8 %v1595
        %v1597 = vlaneseq
        %v1598 = vshrl.u32 %v1597, 7
        %v1599 = vsub.s32 %v1596, %v1598
        %v1600 = vrot.slane %v1593, %v1599
        %1602 = vst [vmem:[%s126] sm:$0xf] %v1600
        %s1603 = sand.u32 %s66, 1
        %s1604 = scalar_lea.sflag [#allocation7], %s1603
        %s1605 = sand.u32 %s66, 1
        %s1606 = smul.addr %s1605, 4
        %s1607 = scalar_lea.vmem [#allocation6], %s1606
        // Predicated region
        $region25: #{tpu_custom_call.1} parent=23 // pred_check
          %p1608 = pneg %p76
        $region26: #{tpu_custom_call.1} parent=23 // pred_check_branch
          %1610 = sbr.rel (%p1608) target = $region28
        $region27: #{tpu_custom_call.1} parent=23 // pred_region
          %s1612 = ssub.s32 64, 64
          %1613 = vsyncadd %s1604, %s1612
          %s1614 = smul.addr %s32, 2
          %s1615 = smul.addr %s1614, 32
          %s1616 = scalar_lea.hbm %s4, %s1615
          %s1618 = sshll.u32 %s1607, 4
          %s1619 = int_to_ptr.vmem [resolvable:$true] %s1618
          %1621 = dma.vmem_to_hbm [thread:$0]  %s1619, 64, %s1616, %s1604
        $region28: #{tpu_custom_call.1} parent=23 // pred_fallthru
          _
      $region24: #{tpu_custom_call.1} parent=5 // pred_fallthru
        _
      %p1622 = scmp.le.s32.totalorder 2, %s27
      // Predicated region
      $region29: #{tpu_custom_call.1} parent=5 // pred_check
        %p1623 = pneg %p1622
      $region30: #{tpu_custom_call.1} parent=5 // pred_check_branch
        %1625 = sbr.rel (%p1623) target = $region32
      $region31: #{tpu_custom_call.1} parent=5 // pred_region
        %s1626 = ssub.s32 %s27, 2
        // Predicated region
        $region33: #{tpu_custom_call.1} parent=31 // pred_check
          %p1627 = pneg %p82
        $region34: #{tpu_custom_call.1} parent=31 // pred_check_branch
          %1629 = sbr.rel (%p1627) target = $region36
        $region35: #{tpu_custom_call.1} parent=31 // pred_region
          %s1630 = sand.u32 %s67, 1
          %s1631 = scalar_lea.sflag [#allocation7], %s1630
          %s1632 = sand.u32 %s67, 1
          %s1633 = smul.addr %s1632, 4
          %s1634 = scalar_lea.vmem [#allocation6], %s1633
          %1635 = dma.done %s1631, 64
        $region36: #{tpu_custom_call.1} parent=31 // pred_fallthru
          _
      $region32: #{tpu_custom_call.1} parent=5 // pred_fallthru
        _
    $region6: #{tpu_custom_call.1} parent=1 // loop_footer
      %s31 = sadd.s32 1, %s27
    $region7: #{tpu_custom_call.1} parent=1 // loop_footer_branch
      %26 = sbr.rel target = $region3
    $region8: #{tpu_custom_call.1} parent=1 // loop_exit
      _
    %1636 = vsyncpa [#allocation7], 1
    %s1637 = scalar_lea.sflag [#allocation7], 1
    %1638 = vsyncpa %s1637, 1

</llo_original>
